<compile_context>
chip_gen: v5e
topology: v5e:2x2
jax: 0.10.0
libtpu: 0.0.40
codegen_flags: <defaults>
</compile_context>

<pallas_src>
import jax
import jax.numpy as jnp
from jax.experimental import pallas as pl
from jax.experimental.pallas import tpu as pltpu

BN_EPS = 1e-5
LANE = 128


def _round_up(x, m):
    return (x + m - 1) // m * m


def _vmem_limit_bytes():
    # Per-generation VMEM budget: half the physical VMEM, capped at 64 MiB
    # (=> 32 MiB on v7x's 64 MiB VMEM, 64 MiB on v5e/v6e's 128 MiB VMEM).
    try:
        cap = int(pltpu.get_tpu_info().vmem_capacity_bytes)
    except Exception:
        cap = 64 * 1024 * 1024          # conservative fallback (-> 32 MiB limit)
    return max(16 * 1024 * 1024, min(cap // 2, 64 * 1024 * 1024))


def _pick_row_tile(hw, max_rows):
    """Largest row tile (multiple of 8) dividing H*W, capped by the VMEM budget."""
    if hw <= max_rows:
        return hw
    for t in range(max_rows, 7, -8):
        if hw % t == 0:
            return t
    # TODO(synk): pad the HW axis for ragged sizes instead of whole-image blocks.
    return hw


# ---------------------------------------------------------------------------
# Kernel: one MXU matmul per (image, row-tile) + bias + BN batch statistics
# ---------------------------------------------------------------------------
def _conv3x3_bias_stats_kernel(xc_ref, w_ref, b_ref, y_ref, s_ref, q_ref):
    # xc_ref: (1, RT, K)   bf16  im2col rows (K = 9*Cin folded into contraction)
    # w_ref : (K, C)       bf16  tap-major weights, Cout zero-padded to C=128k
    # b_ref : (1, C)       f32
    # y_ref : (1, RT, C)   f32   conv output (pre-BN), lane-dense stores
    # s_ref : (1, 1, C)    f32   per-image channel sum    (resident over row tiles)
    # q_ref : (1, 1, C)    f32   per-image channel sum-sq (resident over row tiles)
    @pl.when(pl.program_id(1) == 0)
    def _():
        s_ref[...] = jnp.zeros_like(s_ref)
        q_ref[...] = jnp.zeros_like(q_ref)

    # Single matmul per tile (taps folded into K); f32 accumulation on the MXU.
    y = jnp.dot(xc_ref[0], w_ref[...], preferred_element_type=jnp.float32)
    y = y + b_ref[...]
    y_ref[0] = y
    # BN batch statistics fused into the epilogue (cross-sublane reduce -> XLU).
    # TODO(synk): switch to centered / two-pass statistics if B*H*W grows large
    # enough for E[y^2] - E[y]^2 cancellation to matter.
    s_ref[0] = s_ref[0] + jnp.sum(y, axis=0, keepdims=True)
    q_ref[0] = q_ref[0] + jnp.sum(y * y, axis=0, keepdims=True)


# ---------------------------------------------------------------------------
# One 3x3 'same' conv stage: returns pre-BN conv output + per-image BN sums
# ---------------------------------------------------------------------------
def _conv3x3_stage(x_nhwc, w_kc, b_1c):
    B, H, W, Cin = x_nhwc.shape
    HW, K = H * W, 9 * Cin
    C = w_kc.shape[1]

    # im2col built by XLA strided copies; it fuses with the caller's elementwise
    # prologue (BN affine + PReLU of the previous stage) and is stored in bf16.
    # TODO(synk): for large feature maps keep a single padded slab and do the
    # dx shift in-kernel with pltpu.roll instead of materialising 9x the input.
    xp = jnp.pad(x_nhwc.astype(jnp.bfloat16), ((0, 0), (1, 1), (1, 1), (0, 0)))
    xc = jnp.concatenate(
        [xp[:, dy:dy + H, dx:dx + W, :] for dy in range(3) for dx in range(3)],
        axis=-1).reshape(B, HW, K)

    # Row tile: multiple of 8, sized so double-buffered blocks stay well under
    # the per-generation VMEM limit.
    bytes_per_row = 2 * K + 4 * C
    max_rows = min(1024, max(8, (8 * 1024 * 1024) // bytes_per_row))
    max_rows -= max_rows % 8
    rt = _pick_row_tile(HW, max_rows)
    grid = (B, HW // rt)

    y, s, q = pl.pallas_call(
        _conv3x3_bias_stats_kernel,
        out_shape=(jax.ShapeDtypeStruct((B, HW, C), jnp.float32),
                   jax.ShapeDtypeStruct((B, 1, C), jnp.float32),
                   jax.ShapeDtypeStruct((B, 1, C), jnp.float32)),
        grid_spec=pltpu.PrefetchScalarGridSpec(
            num_scalar_prefetch=0,
            grid=grid,
            in_specs=[
                pl.BlockSpec((1, rt, K), lambda b, t: (b, t, 0)),
                pl.BlockSpec((K, C), lambda b, t: (0, 0)),
                pl.BlockSpec((1, C), lambda b, t: (0, 0)),
            ],
            out_specs=(
                pl.BlockSpec((1, rt, C), lambda b, t: (b, t, 0)),
                pl.BlockSpec((1, 1, C), lambda b, t: (b, 0, 0)),
                pl.BlockSpec((1, 1, C), lambda b, t: (b, 0, 0)),
            ),
        ),
        compiler_params=pltpu.CompilerParams(
            # Images are independent -> megacore-parallel; row tiles carry the
            # resident s/q accumulators -> arbitrary.
            dimension_semantics=("parallel", "arbitrary"),
            vmem_limit_bytes=_vmem_limit_bytes(),
        ),
    )(xc, w_kc, b_1c)
    return y, s, q


def _bn_scale_shift(s, q, gamma, beta, n):
    # Finalize BN batch statistics: tiny (B, C) cross-image reduce in XLA.
    c = gamma.shape[0]
    mean = jnp.sum(s[:, 0, :c], axis=0) / n
    var = jnp.maximum(jnp.sum(q[:, 0, :c], axis=0) / n - mean * mean, 0.0)
    scale = gamma * jax.lax.rsqrt(var + BN_EPS)
    shift = beta - mean * scale
    return scale, shift


# ---------------------------------------------------------------------------
# ResUnit forward (NCHW in / NCHW out, like the torch module)
# ---------------------------------------------------------------------------
def res_unit_forward(params, x_nchw):
    B, _, H, W = x_nchw.shape
    hid = params["bn1_gamma"].shape[0]
    n = float(B * H * W)

    x = jnp.transpose(x_nchw, (0, 2, 3, 1)).astype(jnp.float32)      # NCHW -> NHWC

    # --- seq1: conv -> BN(batch stats) -> PReLU --------------------------------
    y1, s1, q1 = _conv3x3_stage(x, params["conv1_w"], params["conv1_b"])
    sc1, sh1 = _bn_scale_shift(s1, q1, params["bn1_gamma"], params["bn1_beta"], n)
    a1 = y1[:, :, :hid] * sc1 + sh1                                   # BN affine (XLA-fused)
    a1 = jnp.where(a1 >= 0.0, a1, params["prelu_a"] * a1)             # PReLU (XLA-fused)

    # --- seq2: conv -> BN(batch stats) ------------------------------------------
    y2, s2, q2 = _conv3x3_stage(a1.reshape(B, H, W, hid),
                                params["conv2_w"], params["conv2_b"])
    sc2, sh2 = _bn_scale_shift(s2, q2, params["bn2_gamma"], params["bn2_beta"], n)
    out = y2[:, :, :hid] * sc2 + sh2                                  # fused into transpose
    return jnp.transpose(out.reshape(B, H, W, hid), (0, 3, 1, 2))     # NHWC -> NCHW


# ---------------------------------------------------------------------------
# Parameters: torch-layout init + ONE-time repack into the kernel layout
# ---------------------------------------------------------------------------
def init_params(key, in_ch, hid_ch):
    """Torch-layout parameters (Conv2d weight: (Cout, Cin, 3, 3)); deterministic."""
    def conv_w(k, cin, cout):
        return jax.random.normal(k, (cout, cin, 3, 3), jnp.float32) / jnp.sqrt(9.0 * cin)

    k1, k2, k3, k4 = jax.random.split(key, 4)
    return {
        "conv1_w": conv_w(k1, in_ch, hid_ch),
        "conv1_b": jax.random.normal(k2, (hid_ch,), jnp.float32) * 0.01,
        "bn1_gamma": jnp.ones((hid_ch,), jnp.float32),
        "bn1_beta": jnp.zeros((hid_ch,), jnp.float32),
        "prelu_a": jnp.float32(0.25),     # nn.PReLU() default: one shared slope
        "conv2_w": conv_w(k3, hid_ch, hid_ch),
        "conv2_b": jax.random.normal(k4, (hid_ch,), jnp.float32) * 0.01,
        "bn2_gamma": jnp.ones((hid_ch,), jnp.float32),
        "bn2_beta": jnp.zeros((hid_ch,), jnp.float32),
    }


def pack_params(raw):
    """(Cout,Cin,3,3) -> (9*Cin, C_pad) bf16 tap-major weights; bias -> (1, C_pad)
    f32; Cout zero-padded to a lane-dense multiple of 128.  Done once at init."""
    def pack_w(w):
        cout, cin = w.shape[0], w.shape[1]
        c_pad = _round_up(cout, LANE)
        wk = jnp.transpose(w, (2, 3, 1, 0)).reshape(9 * cin, cout)    # (kh,kw,ci,co)
        return jnp.pad(wk, ((0, 0), (0, c_pad - cout))).astype(jnp.bfloat16)

    def pack_b(b):
        c_pad = _round_up(b.shape[0], LANE)
        return jnp.pad(b, (0, c_pad - b.shape[0])).reshape(1, c_pad).astype(jnp.float32)

    p = dict(raw)
    p["conv1_w"], p["conv1_b"] = pack_w(raw["conv1_w"]), pack_b(raw["conv1_b"])
    p["conv2_w"], p["conv2_b"] = pack_w(raw["conv2_w"]), pack_b(raw["conv2_b"])
    return p


# ---------------------------------------------------------------------------
# Pure-XLA f32 reference (same math as the torch module's training forward)
# ---------------------------------------------------------------------------
def _ref_forward(raw, x_nchw):
    def conv_bn(x, w, b, gamma, beta):
        w_hwio = jnp.transpose(w, (2, 3, 1, 0))
        y = jax.lax.conv_general_dilated(
            x, w_hwio, window_strides=(1, 1), padding=((1, 1), (1, 1)),
            dimension_numbers=("NHWC", "HWIO", "NHWC")) + b
        mean = jnp.mean(y, axis=(0, 1, 2))
        var = jnp.mean(jnp.square(y - mean), axis=(0, 1, 2))
        return (y - mean) * jax.lax.rsqrt(var + BN_EPS) * gamma + beta

    x = jnp.transpose(x_nchw, (0, 2, 3, 1)).astype(jnp.float32)
    h = conv_bn(x, raw["conv1_w"], raw["conv1_b"], raw["bn1_gamma"], raw["bn1_beta"])
    h = jnp.where(h >= 0.0, h, raw["prelu_a"] * h)
    h = conv_bn(h, raw["conv2_w"], raw["conv2_b"], raw["bn2_gamma"], raw["bn2_beta"])
    return jnp.transpose(h, (0, 3, 1, 2))


if __name__ == "__main__":
    B, IN_CH, HID_CH, H, W = 2, 4, 32, 16, 16
    key = jax.random.PRNGKey(0)
    kp, kx = jax.random.split(key)
    raw = init_params(kp, IN_CH, HID_CH)
    params = pack_params(raw)
    x = jax.random.normal(kx, (B, IN_CH, H, W), jnp.float32)

    fwd = jax.jit(res_unit_forward)
    out = fwd(params, x)
    jax.block_until_ready(out)
    assert out.shape == (B, HID_CH, H, W), out.shape

    ref = jax.jit(_ref_forward)(raw, x)
    jax.block_until_ready(ref)
    err = float(jnp.max(jnp.abs(out - ref)))
    assert err < 2e-1, f"max abs error vs XLA reference too large: {err}"
    print("KERNEL_OK")
</pallas_src>

<mosaic_0001>
module attributes {stable_mosaic.version = 11 : i64} {
  func.func @_conv3x3_bias_stats_kernel(%arg0: i32, %arg1: i32, %arg2: memref<1x256x36xbf16, #tpu.memory_space<vmem>>, %arg3: memref<36x128xbf16, #tpu.memory_space<vmem>>, %arg4: memref<1x128xf32, #tpu.memory_space<vmem>>, %arg5: memref<1x256x128xf32, #tpu.memory_space<vmem>>, %arg6: memref<1x1x128xf32, #tpu.memory_space<vmem>>, %arg7: memref<1x1x128xf32, #tpu.memory_space<vmem>>) attributes {dimension_semantics = [#tpu.dimension_semantics<parallel>, #tpu.dimension_semantics<arbitrary>], iteration_bounds = array<i64: 2, 1>, scalar_prefetch = 0 : i64, scratch_operands = 0 : i64, tpu.core_type = #tpu.core_type<tc>, window_params = [{transform_indices = @transform_0, window_bounds = array<i64: 1, 256, 36>}, {pipeline_mode = #tpu.pipeline_mode<synchronous>, transform_indices = @transform_1, window_bounds = array<i64: 36, 128>}, {pipeline_mode = #tpu.pipeline_mode<synchronous>, transform_indices = @transform_2, window_bounds = array<i64: 1, 128>}, {transform_indices = @transform_3, window_bounds = array<i64: 1, 256, 128>}, {transform_indices = @transform_4, window_bounds = array<i64: 1, 1, 128>}, {transform_indices = @transform_5, window_bounds = array<i64: 1, 1, 128>}]} {
    %c0_i32 = arith.constant 0 : i32
    %0 = arith.cmpi eq, %arg1, %c0_i32 : i32
    %1 = arith.extui %0 : i1 to i32
    %c0_i32_0 = arith.constant 0 : i32
    %2 = arith.cmpi ne, %1, %c0_i32_0 : i32
    scf.if %2 {
      %cst_24 = arith.constant 0.000000e+00 : f32
      %30 = vector.broadcast %cst_24 : f32 to vector<1x1x128xf32>
      %c0_25 = arith.constant 0 : index
      %c0_26 = arith.constant 0 : index
      %c0_27 = arith.constant 0 : index
      %31 = vector.load %arg6[%c0_25, %c0_26, %c0_27] : memref<1x1x128xf32, #tpu.memory_space<vmem>>, vector<1x1x128xf32>
      tpu.vector_store %arg6[%c0_25, %c0_26, %c0_27], %30 {strides = array<i32>} : memref<1x1x128xf32, #tpu.memory_space<vmem>>, vector<1x1x128xf32>,
      %cst_28 = arith.constant 0.000000e+00 : f32
      %32 = vector.broadcast %cst_28 : f32 to vector<1x1x128xf32>
      %c0_29 = arith.constant 0 : index
      %c0_30 = arith.constant 0 : index
      %c0_31 = arith.constant 0 : index
      %33 = vector.load %arg7[%c0_29, %c0_30, %c0_31] : memref<1x1x128xf32, #tpu.memory_space<vmem>>, vector<1x1x128xf32>
      tpu.vector_store %arg7[%c0_29, %c0_30, %c0_31], %32 {strides = array<i32>} : memref<1x1x128xf32, #tpu.memory_space<vmem>>, vector<1x1x128xf32>,
    } else {
    }
    %c0 = arith.constant 0 : index
    %c0_1 = arith.constant 0 : index
    %c0_2 = arith.constant 0 : index
    %3 = vector.load %arg2[%c0, %c0_1, %c0_2] : memref<1x256x36xbf16, #tpu.memory_space<vmem>>, vector<1x256x36xbf16>
    %4 = vector.shape_cast %3 : vector<1x256x36xbf16> to vector<256x36xbf16>
    %c0_3 = arith.constant 0 : index
    %c0_4 = arith.constant 0 : index
    %5 = vector.load %arg3[%c0_3, %c0_4] : memref<36x128xbf16, #tpu.memory_space<vmem>>, vector<36x128xbf16>
    %cst = arith.constant dense<0.000000e+00> : vector<256x128xf32>
    %6 = tpu.matmul %4, %5, %cst {dimension_numbers = #tpu.dot_dimension_numbers<[1], [0], [0], [1], [0, 0, 1, 1], [], []>} : vector<256x36xbf16>, vector<36x128xbf16>, vector<256x128xf32> -> vector<256x128xf32>
    %c0_5 = arith.constant 0 : index
    %c0_6 = arith.constant 0 : index
    %7 = vector.load %arg4[%c0_5, %c0_6] : memref<1x128xf32, #tpu.memory_space<vmem>>, vector<1x128xf32>
    %8 = vector.broadcast %7 : vector<1x128xf32> to vector<256x128xf32>
    %9 = arith.addf %6, %8 : vector<256x128xf32>
    %c0_7 = arith.constant 0 : index
    %c0_8 = arith.constant 0 : index
    %c0_9 = arith.constant 0 : index
    %10 = vector.load %arg5[%c0_7, %c0_8, %c0_9] : memref<1x256x128xf32, #tpu.memory_space<vmem>>, vector<1x256x128xf32>
    %11 = vector.shape_cast %10 : vector<1x256x128xf32> to vector<256x128xf32>
    %12 = vector.shape_cast %9 : vector<256x128xf32> to vector<1x256x128xf32>
    tpu.vector_store %arg5[%c0_7, %c0_8, %c0_9], %12 {strides = array<i32>} : memref<1x256x128xf32, #tpu.memory_space<vmem>>, vector<1x256x128xf32>,
    %c0_10 = arith.constant 0 : index
    %c0_11 = arith.constant 0 : index
    %c0_12 = arith.constant 0 : index
    %13 = vector.load %arg6[%c0_10, %c0_11, %c0_12] : memref<1x1x128xf32, #tpu.memory_space<vmem>>, vector<1x1x128xf32>
    %14 = vector.shape_cast %13 : vector<1x1x128xf32> to vector<1x128xf32>
    %cst_13 = arith.constant dense<0.000000e+00> : vector<128xf32>
    %15 = vector.multi_reduction <add>, %9, %cst_13 [0] : vector<256x128xf32> to vector<128xf32>
    %16 = vector.shape_cast %15 : vector<128xf32> to vector<1x128xf32>
    %17 = arith.addf %14, %16 : vector<1x128xf32>
    %c0_14 = arith.constant 0 : index
    %c0_15 = arith.constant 0 : index
    %c0_16 = arith.constant 0 : index
    %18 = vector.load %arg6[%c0_14, %c0_15, %c0_16] : memref<1x1x128xf32, #tpu.memory_space<vmem>>, vector<1x1x128xf32>
    %19 = vector.shape_cast %18 : vector<1x1x128xf32> to vector<1x128xf32>
    %20 = vector.shape_cast %17 : vector<1x128xf32> to vector<1x1x128xf32>
    tpu.vector_store %arg6[%c0_14, %c0_15, %c0_16], %20 {strides = array<i32>} : memref<1x1x128xf32, #tpu.memory_space<vmem>>, vector<1x1x128xf32>,
    %c0_17 = arith.constant 0 : index
    %c0_18 = arith.constant 0 : index
    %c0_19 = arith.constant 0 : index
    %21 = vector.load %arg7[%c0_17, %c0_18, %c0_19] : memref<1x1x128xf32, #tpu.memory_space<vmem>>, vector<1x1x128xf32>
    %22 = vector.shape_cast %21 : vector<1x1x128xf32> to vector<1x128xf32>
    %23 = arith.mulf %9, %9 : vector<256x128xf32>
    %cst_20 = arith.constant dense<0.000000e+00> : vector<128xf32>
    %24 = vector.multi_reduction <add>, %23, %cst_20 [0] : vector<256x128xf32> to vector<128xf32>
    %25 = vector.shape_cast %24 : vector<128xf32> to vector<1x128xf32>
    %26 = arith.addf %22, %25 : vector<1x128xf32>
    %c0_21 = arith.constant 0 : index
    %c0_22 = arith.constant 0 : index
    %c0_23 = arith.constant 0 : index
    %27 = vector.load %arg7[%c0_21, %c0_22, %c0_23] : memref<1x1x128xf32, #tpu.memory_space<vmem>>, vector<1x1x128xf32>
    %28 = vector.shape_cast %27 : vector<1x1x128xf32> to vector<1x128xf32>
    %29 = vector.shape_cast %26 : vector<1x128xf32> to vector<1x1x128xf32>
    tpu.vector_store %arg7[%c0_21, %c0_22, %c0_23], %29 {strides = array<i32>} : memref<1x1x128xf32, #tpu.memory_space<vmem>>, vector<1x1x128xf32>,
    return
  }
  func.func @transform_0(%arg0: i32, %arg1: i32) -> (i32, i32, i32) {
    %c0_i32 = arith.constant 0 : i32
    %c0_i32_0 = arith.constant 0 : i32
    return %arg0, %arg1, %c0_i32 : i32, i32, i32
  }
  func.func @transform_1(%arg0: i32, %arg1: i32) -> (i32, i32) {
    %c0_i32 = arith.constant 0 : i32
    %c0_i32_0 = arith.constant 0 : i32
    %c0_i32_1 = arith.constant 0 : i32
    return %c0_i32, %c0_i32_0 : i32, i32
  }
  func.func @transform_2(%arg0: i32, %arg1: i32) -> (i32, i32) {
    %c0_i32 = arith.constant 0 : i32
    %c0_i32_0 = arith.constant 0 : i32
    %c0_i32_1 = arith.constant 0 : i32
    return %c0_i32, %c0_i32_0 : i32, i32
  }
  func.func @transform_3(%arg0: i32, %arg1: i32) -> (i32, i32, i32) {
    %c0_i32 = arith.constant 0 : i32
    %c0_i32_0 = arith.constant 0 : i32
    return %arg0, %arg1, %c0_i32 : i32, i32, i32
  }
  func.func @transform_4(%arg0: i32, %arg1: i32) -> (i32, i32, i32) {
    %c0_i32 = arith.constant 0 : i32
    %c0_i32_0 = arith.constant 0 : i32
    %c0_i32_1 = arith.constant 0 : i32
    return %arg0, %c0_i32, %c0_i32_0 : i32, i32, i32
  }
  func.func @transform_5(%arg0: i32, %arg1: i32) -> (i32, i32, i32) {
    %c0_i32 = arith.constant 0 : i32
    %c0_i32_0 = arith.constant 0 : i32
    %c0_i32_1 = arith.constant 0 : i32
    return %arg0, %c0_i32, %c0_i32_0 : i32, i32, i32
  }
}

module attributes {stable_mosaic.version = 11 : i64} {
  func.func @_conv3x3_bias_stats_kernel(%arg0: i32, %arg1: i32, %arg2: memref<1x256x288xbf16, #tpu.memory_space<vmem>>, %arg3: memref<288x128xbf16, #tpu.memory_space<vmem>>, %arg4: memref<1x128xf32, #tpu.memory_space<vmem>>, %arg5: memref<1x256x128xf32, #tpu.memory_space<vmem>>, %arg6: memref<1x1x128xf32, #tpu.memory_space<vmem>>, %arg7: memref<1x1x128xf32, #tpu.memory_space<vmem>>) attributes {dimension_semantics = [#tpu.dimension_semantics<parallel>, #tpu.dimension_semantics<arbitrary>], iteration_bounds = array<i64: 2, 1>, scalar_prefetch = 0 : i64, scratch_operands = 0 : i64, tpu.core_type = #tpu.core_type<tc>, window_params = [{transform_indices = @transform_0, window_bounds = array<i64: 1, 256, 288>}, {pipeline_mode = #tpu.pipeline_mode<synchronous>, transform_indices = @transform_1, window_bounds = array<i64: 288, 128>}, {pipeline_mode = #tpu.pipeline_mode<synchronous>, transform_indices = @transform_2, window_bounds = array<i64: 1, 128>}, {transform_indices = @transform_3, window_bounds = array<i64: 1, 256, 128>}, {transform_indices = @transform_4, window_bounds = array<i64: 1, 1, 128>}, {transform_indices = @transform_5, window_bounds = array<i64: 1, 1, 128>}]} {
    %c0_i32 = arith.constant 0 : i32
    %0 = arith.cmpi eq, %arg1, %c0_i32 : i32
    %1 = arith.extui %0 : i1 to i32
    %c0_i32_0 = arith.constant 0 : i32
    %2 = arith.cmpi ne, %1, %c0_i32_0 : i32
    scf.if %2 {
      %cst_24 = arith.constant 0.000000e+00 : f32
      %30 = vector.broadcast %cst_24 : f32 to vector<1x1x128xf32>
      %c0_25 = arith.constant 0 : index
      %c0_26 = arith.constant 0 : index
      %c0_27 = arith.constant 0 : index
      %31 = vector.load %arg6[%c0_25, %c0_26, %c0_27] : memref<1x1x128xf32, #tpu.memory_space<vmem>>, vector<1x1x128xf32>
      tpu.vector_store %arg6[%c0_25, %c0_26, %c0_27], %30 {strides = array<i32>} : memref<1x1x128xf32, #tpu.memory_space<vmem>>, vector<1x1x128xf32>,
      %cst_28 = arith.constant 0.000000e+00 : f32
      %32 = vector.broadcast %cst_28 : f32 to vector<1x1x128xf32>
      %c0_29 = arith.constant 0 : index
      %c0_30 = arith.constant 0 : index
      %c0_31 = arith.constant 0 : index
      %33 = vector.load %arg7[%c0_29, %c0_30, %c0_31] : memref<1x1x128xf32, #tpu.memory_space<vmem>>, vector<1x1x128xf32>
      tpu.vector_store %arg7[%c0_29, %c0_30, %c0_31], %32 {strides = array<i32>} : memref<1x1x128xf32, #tpu.memory_space<vmem>>, vector<1x1x128xf32>,
    } else {
    }
    %c0 = arith.constant 0 : index
    %c0_1 = arith.constant 0 : index
    %c0_2 = arith.constant 0 : index
    %3 = vector.load %arg2[%c0, %c0_1, %c0_2] : memref<1x256x288xbf16, #tpu.memory_space<vmem>>, vector<1x256x288xbf16>
    %4 = vector.shape_cast %3 : vector<1x256x288xbf16> to vector<256x288xbf16>
    %c0_3 = arith.constant 0 : index
    %c0_4 = arith.constant 0 : index
    %5 = vector.load %arg3[%c0_3, %c0_4] : memref<288x128xbf16, #tpu.memory_space<vmem>>, vector<288x128xbf16>
    %cst = arith.constant dense<0.000000e+00> : vector<256x128xf32>
    %6 = tpu.matmul %4, %5, %cst {dimension_numbers = #tpu.dot_dimension_numbers<[1], [0], [0], [1], [0, 0, 1, 1], [], []>} : vector<256x288xbf16>, vector<288x128xbf16>, vector<256x128xf32> -> vector<256x128xf32>
    %c0_5 = arith.constant 0 : index
    %c0_6 = arith.constant 0 : index
    %7 = vector.load %arg4[%c0_5, %c0_6] : memref<1x128xf32, #tpu.memory_space<vmem>>, vector<1x128xf32>
    %8 = vector.broadcast %7 : vector<1x128xf32> to vector<256x128xf32>
    %9 = arith.addf %6, %8 : vector<256x128xf32>
    %c0_7 = arith.constant 0 : index
    %c0_8 = arith.constant 0 : index
    %c0_9 = arith.constant 0 : index
    %10 = vector.load %arg5[%c0_7, %c0_8, %c0_9] : memref<1x256x128xf32, #tpu.memory_space<vmem>>, vector<1x256x128xf32>
    %11 = vector.shape_cast %10 : vector<1x256x128xf32> to vector<256x128xf32>
    %12 = vector.shape_cast %9 : vector<256x128xf32> to vector<1x256x128xf32>
    tpu.vector_store %arg5[%c0_7, %c0_8, %c0_9], %12 {strides = array<i32>} : memref<1x256x128xf32, #tpu.memory_space<vmem>>, vector<1x256x128xf32>,
    %c0_10 = arith.constant 0 : index
    %c0_11 = arith.constant 0 : index
    %c0_12 = arith.constant 0 : index
    %13 = vector.load %arg6[%c0_10, %c0_11, %c0_12] : memref<1x1x128xf32, #tpu.memory_space<vmem>>, vector<1x1x128xf32>
    %14 = vector.shape_cast %13 : vector<1x1x128xf32> to vector<1x128xf32>
    %cst_13 = arith.constant dense<0.000000e+00> : vector<128xf32>
    %15 = vector.multi_reduction <add>, %9, %cst_13 [0] : vector<256x128xf32> to vector<128xf32>
    %16 = vector.shape_cast %15 : vector<128xf32> to vector<1x128xf32>
    %17 = arith.addf %14, %16 : vector<1x128xf32>
    %c0_14 = arith.constant 0 : index
    %c0_15 = arith.constant 0 : index
    %c0_16 = arith.constant 0 : index
    %18 = vector.load %arg6[%c0_14, %c0_15, %c0_16] : memref<1x1x128xf32, #tpu.memory_space<vmem>>, vector<1x1x128xf32>
    %19 = vector.shape_cast %18 : vector<1x1x128xf32> to vector<1x128xf32>
    %20 = vector.shape_cast %17 : vector<1x128xf32> to vector<1x1x128xf32>
    tpu.vector_store %arg6[%c0_14, %c0_15, %c0_16], %20 {strides = array<i32>} : memref<1x1x128xf32, #tpu.memory_space<vmem>>, vector<1x1x128xf32>,
    %c0_17 = arith.constant 0 : index
    %c0_18 = arith.constant 0 : index
    %c0_19 = arith.constant 0 : index
    %21 = vector.load %arg7[%c0_17, %c0_18, %c0_19] : memref<1x1x128xf32, #tpu.memory_space<vmem>>, vector<1x1x128xf32>
    %22 = vector.shape_cast %21 : vector<1x1x128xf32> to vector<1x128xf32>
    %23 = arith.mulf %9, %9 : vector<256x128xf32>
    %cst_20 = arith.constant dense<0.000000e+00> : vector<128xf32>
    %24 = vector.multi_reduction <add>, %23, %cst_20 [0] : vector<256x128xf32> to vector<128xf32>
    %25 = vector.shape_cast %24 : vector<128xf32> to vector<1x128xf32>
    %26 = arith.addf %22, %25 : vector<1x128xf32>
    %c0_21 = arith.constant 0 : index
    %c0_22 = arith.constant 0 : index
    %c0_23 = arith.constant 0 : index
    %27 = vector.load %arg7[%c0_21, %c0_22, %c0_23] : memref<1x1x128xf32, #tpu.memory_space<vmem>>, vector<1x1x128xf32>
    %28 = vector.shape_cast %27 : vector<1x1x128xf32> to vector<1x128xf32>
    %29 = vector.shape_cast %26 : vector<1x128xf32> to vector<1x1x128xf32>
    tpu.vector_store %arg7[%c0_21, %c0_22, %c0_23], %29 {strides = array<i32>} : memref<1x1x128xf32, #tpu.memory_space<vmem>>, vector<1x1x128xf32>,
    return
  }
  func.func @transform_0(%arg0: i32, %arg1: i32) -> (i32, i32, i32) {
    %c0_i32 = arith.constant 0 : i32
    %c0_i32_0 = arith.constant 0 : i32
    return %arg0, %arg1, %c0_i32 : i32, i32, i32
  }
  func.func @transform_1(%arg0: i32, %arg1: i32) -> (i32, i32) {
    %c0_i32 = arith.constant 0 : i32
    %c0_i32_0 = arith.constant 0 : i32
    %c0_i32_1 = arith.constant 0 : i32
    return %c0_i32, %c0_i32_0 : i32, i32
  }
  func.func @transform_2(%arg0: i32, %arg1: i32) -> (i32, i32) {
    %c0_i32 = arith.constant 0 : i32
    %c0_i32_0 = arith.constant 0 : i32
    %c0_i32_1 = arith.constant 0 : i32
    return %c0_i32, %c0_i32_0 : i32, i32
  }
  func.func @transform_3(%arg0: i32, %arg1: i32) -> (i32, i32, i32) {
    %c0_i32 = arith.constant 0 : i32
    %c0_i32_0 = arith.constant 0 : i32
    return %arg0, %arg1, %c0_i32 : i32, i32, i32
  }
  func.func @transform_4(%arg0: i32, %arg1: i32) -> (i32, i32, i32) {
    %c0_i32 = arith.constant 0 : i32
    %c0_i32_0 = arith.constant 0 : i32
    %c0_i32_1 = arith.constant 0 : i32
    return %arg0, %c0_i32, %c0_i32_0 : i32, i32, i32
  }
  func.func @transform_5(%arg0: i32, %arg1: i32) -> (i32, i32, i32) {
    %c0_i32 = arith.constant 0 : i32
    %c0_i32_0 = arith.constant 0 : i32
    %c0_i32_1 = arith.constant 0 : i32
    return %arg0, %c0_i32, %c0_i32_0 : i32, i32, i32
  }
}

</mosaic_0001>

<llo_original>
// kernel: res_unit_forward.2
$region0: #{res_unit_forward.2}
  #allocation0 [shape = 'u32[]', space=smem, size = 0x4, offset = 0x4, fixed_abs, tag = 'smem constant byte address 0x4 - core index']
  #allocation1 [shape = 'u32[72,128]{1,0:T(1,128)}', space=vmem, size = 0x9000, scoped, tag = 'internal scratch']
  %s0 = inlined_call_operand.vmem [shape: bf16[2,256,36], index: 0, kind: input, shape index: {}]
  %s1 = inlined_call_operand.vmem [shape: bf16[36,128], index: 1, kind: input, shape index: {}]
  %s2 = inlined_call_operand.vmem [shape: f32[1,128], index: 2, kind: input, shape index: {}]
  %s3 = inlined_call_operand.vmem [shape: f32[2,256,128], index: 3, kind: output, shape index: {0}]
  %s4 = inlined_call_operand.vmem [shape: f32[2,1,128], index: 4, kind: output, shape index: {1}]
  %s5 = inlined_call_operand.vmem [shape: f32[2,1,128], index: 5, kind: output, shape index: {2}]
  %6 = xla_tuple %s3, %s4, %s5
  %s7 = sld [smem:[#allocation0]]
  $region65: #{res_unit_forward.2} parent=0
    _
  %s9 = ssub.s32 1, %s7
  %s10 = scalar_select 0, %s9, %s7
  loop: start=0, step=1, limit=4
  $region2: #{res_unit_forward.2} parent=0 // loop_pre_header
    _
  $region3: #{res_unit_forward.2} parent=0 // loop_header
    %s12 = sphi 0, %s16
    %p13 = scmp.ge.s32.totalorder %s12, 4
    %s19 = sphi 0, %s31
    %s20 = sphi 0, %s27
    %s21 = sphi 0, %s19
    %s22 = sphi 0, %s20
    %s23 = sphi 0, %s21
    %s24 = sphi 0, %s22
    %s36 = sphi 0, %s38
    %s39 = sphi 0, %s36
    %s40 = sphi 0, %s39
    %s56 = sphi 0, %s40
    %s60 = sphi 0, %s60
    %s62 = sphi 0, %s60
    %s63 = sphi 0, %s62
    %s77 = sphi 0, %s63
    %s81 = sphi 0, %s81
    %s83 = sphi 0, %s81
    %s84 = sphi 0, %s83
    %s98 = sphi 0, %s84
    %s106 = sphi 0, %s108
    %s109 = sphi 0, %s106
    %s110 = sphi 0, %s109
    %s126 = sphi 0, %s110
    %s132 = sphi 0, %s134
    %s135 = sphi 0, %s132
    %s136 = sphi 0, %s135
    %s152 = sphi 0, %s136
    %s158 = sphi 0, %s160
    %s161 = sphi 0, %s158
    %s162 = sphi 0, %s161
    %s178 = sphi 0, %s162
  $region4: #{res_unit_forward.2} parent=0 // loop_header_branch
    %15 = sbr.rel (%p13) target = $region8
  $region5: #{res_unit_forward.2} parent=0 // loop_body
    %s17 = ssub.s32 %s12, 1
    %s18 = ssub.s32 %s12, 2
    %s25 = sadd.s32 1, %s20
    %p26 = scmp.ge.s32.totalorder %s25, 1
    %s27 = scalar_select %p26, 0, %s25
    %s28 = sadd.s32 1, %s19
    %s29 = scalar_select %p26, %s28, %s19
    %p30 = scmp.ge.s32.totalorder %s29, 2
    %s31 = scalar_select %p30, 0, %s29
    %s32 = ssub.s32 %s19, %s31
    %s33 = ssub.s32 %s20, %s27
    %s34 = sor.u32 %s32, %s33
    %p35 = scmp.eq.s32.totalorder %s34, 0
    %s37 = sadd.s32 %s36, 1
    %s38 = scalar_select %p35, %s36, %s37
    %p41 = pneg %p35
    %p42 = scmp.eq.s32.totalorder %s12, 1
    %p43 = por %p41, %p42
    %p44 = scmp.ne.s32.totalorder %s36, %s39
    %p45 = scmp.eq.s32.totalorder %s12, 0
    %p46 = por %p44, %p45
    %p47 = scmp.ne.s32.totalorder %s36, %s39
    %p48 = scmp.eq.s32.totalorder %s17, 1
    %p49 = por %p47, %p48
    %p50 = scmp.ne.s32.totalorder %s39, %s40
    %p51 = scmp.eq.s32.totalorder %s17, 0
    %p52 = por %p50, %p51
    %p53 = scmp.ne.s32.totalorder %s39, %s40
    %p54 = scmp.eq.s32.totalorder %s18, 1
    %p55 = por %p53, %p54
    %p57 = scmp.ne.s32.totalorder %s40, %s56
    %p58 = scmp.eq.s32.totalorder %s18, 0
    %p59 = por %p57, %p58
    %s61 = sadd.s32 %s60, 1
    %p64 = scmp.eq.s32.totalorder %s12, 1
    %p65 = scmp.ne.s32.totalorder %s60, %s62
    %p66 = scmp.eq.s32.totalorder %s12, 0
    %p67 = por %p65, %p66
    %p68 = scmp.ne.s32.totalorder %s60, %s62
    %p69 = scmp.eq.s32.totalorder %s17, 1
    %p70 = por %p68, %p69
    %p71 = scmp.ne.s32.totalorder %s62, %s63
    %p72 = scmp.eq.s32.totalorder %s17, 0
    %p73 = por %p71, %p72
    %p74 = scmp.ne.s32.totalorder %s62, %s63
    %p75 = scmp.eq.s32.totalorder %s18, 1
    %p76 = por %p74, %p75
    %p78 = scmp.ne.s32.totalorder %s63, %s77
    %p79 = scmp.eq.s32.totalorder %s18, 0
    %p80 = por %p78, %p79
    %s82 = sadd.s32 %s81, 1
    %p85 = scmp.eq.s32.totalorder %s12, 1
    %p86 = scmp.ne.s32.totalorder %s81, %s83
    %p87 = scmp.eq.s32.totalorder %s12, 0
    %p88 = por %p86, %p87
    %p89 = scmp.ne.s32.totalorder %s81, %s83
    %p90 = scmp.eq.s32.totalorder %s17, 1
    %p91 = por %p89, %p90
    %p92 = scmp.ne.s32.totalorder %s83, %s84
    %p93 = scmp.eq.s32.totalorder %s17, 0
    %p94 = por %p92, %p93
    %p95 = scmp.ne.s32.totalorder %s83, %s84
    %p96 = scmp.eq.s32.totalorder %s18, 1
    %p97 = por %p95, %p96
    %p99 = scmp.ne.s32.totalorder %s84, %s98
    %p100 = scmp.eq.s32.totalorder %s18, 0
    %p101 = por %p99, %p100
    %s102 = ssub.s32 %s19, %s31
    %s103 = ssub.s32 %s20, %s27
    %s104 = sor.u32 %s102, %s103
    %p105 = scmp.eq.s32.totalorder %s104, 0
    %s107 = sadd.s32 %s106, 1
    %s108 = scalar_select %p105, %s106, %s107
    %p111 = pneg %p105
    %p112 = scmp.eq.s32.totalorder %s12, 1
    %p113 = por %p111, %p112
    %p114 = scmp.ne.s32.totalorder %s106, %s109
    %p115 = scmp.eq.s32.totalorder %s12, 0
    %p116 = por %p114, %p115
    %p117 = scmp.ne.s32.totalorder %s106, %s109
    %p118 = scmp.eq.s32.totalorder %s17, 1
    %p119 = por %p117, %p118
    %p120 = scmp.ne.s32.totalorder %s109, %s110
    %p121 = scmp.eq.s32.totalorder %s17, 0
    %p122 = por %p120, %p121
    %p123 = scmp.ne.s32.totalorder %s109, %s110
    %p124 = scmp.eq.s32.totalorder %s18, 1
    %p125 = por %p123, %p124
    %p127 = scmp.ne.s32.totalorder %s110, %s126
    %p128 = scmp.eq.s32.totalorder %s18, 0
    %p129 = por %p127, %p128
    %s130 = ssub.s32 %s19, %s31
    %p131 = scmp.eq.s32.totalorder %s130, 0
    %s133 = sadd.s32 %s132, 1
    %s134 = scalar_select %p131, %s132, %s133
    %p137 = pneg %p131
    %p138 = scmp.eq.s32.totalorder %s12, 1
    %p139 = por %p137, %p138
    %p140 = scmp.ne.s32.totalorder %s132, %s135
    %p141 = scmp.eq.s32.totalorder %s12, 0
    %p142 = por %p140, %p141
    %p143 = scmp.ne.s32.totalorder %s132, %s135
    %p144 = scmp.eq.s32.totalorder %s17, 1
    %p145 = por %p143, %p144
    %p146 = scmp.ne.s32.totalorder %s135, %s136
    %p147 = scmp.eq.s32.totalorder %s17, 0
    %p148 = por %p146, %p147
    %p149 = scmp.ne.s32.totalorder %s135, %s136
    %p150 = scmp.eq.s32.totalorder %s18, 1
    %p151 = por %p149, %p150
    %p153 = scmp.ne.s32.totalorder %s136, %s152
    %p154 = scmp.eq.s32.totalorder %s18, 0
    %p155 = por %p153, %p154
    %s156 = ssub.s32 %s19, %s31
    %p157 = scmp.eq.s32.totalorder %s156, 0
    %s159 = sadd.s32 %s158, 1
    %s160 = scalar_select %p157, %s158, %s159
    %p163 = pneg %p157
    %p164 = scmp.eq.s32.totalorder %s12, 1
    %p165 = por %p163, %p164
    %p166 = scmp.ne.s32.totalorder %s158, %s161
    %p167 = scmp.eq.s32.totalorder %s12, 0
    %p168 = por %p166, %p167
    %p169 = scmp.ne.s32.totalorder %s158, %s161
    %p170 = scmp.eq.s32.totalorder %s17, 1
    %p171 = por %p169, %p170
    %p172 = scmp.ne.s32.totalorder %s161, %s162
    %p173 = scmp.eq.s32.totalorder %s17, 0
    %p174 = por %p172, %p173
    %p175 = scmp.ne.s32.totalorder %s161, %s162
    %p176 = scmp.eq.s32.totalorder %s18, 1
    %p177 = por %p175, %p176
    %p179 = scmp.ne.s32.totalorder %s162, %s178
    %p180 = scmp.eq.s32.totalorder %s18, 0
    %p181 = por %p179, %p180
    %p182 = scmp.le.s32.totalorder 1, %s12
    %p183 = scmp.lt.s32.totalorder %s12, 3
    %p184 = pnand %p182, %p183
    %p185 = pneg %p184
    // Predicated region
    $region9: #{res_unit_forward.2} parent=5 // pred_check
      _
    $region10: #{res_unit_forward.2} parent=5 // pred_check_branch
      %187 = sbr.rel (%p184) target = $region12
    $region11: #{res_unit_forward.2} parent=5 // pred_region
      %s188 = ssub.s32 %s12, 1
      // Predicated region
      $region13: #{res_unit_forward.2} parent=11 // pred_check
        %p189 = pneg %p73
      $region14: #{res_unit_forward.2} parent=11 // pred_check_branch
        %191 = sbr.rel (%p189) target = $region16
      $region15: #{res_unit_forward.2} parent=11 // pred_region
        _
      $region16: #{res_unit_forward.2} parent=11 // pred_fallthru
        _
      // Predicated region
      $region17: #{res_unit_forward.2} parent=11 // pred_check
        %p192 = pneg %p94
      $region18: #{res_unit_forward.2} parent=11 // pred_check_branch
        %194 = sbr.rel (%p192) target = $region20
      $region19: #{res_unit_forward.2} parent=11 // pred_region
        _
      $region20: #{res_unit_forward.2} parent=11 // pred_fallthru
        _
    $region12: #{res_unit_forward.2} parent=5 // pred_fallthru
      _
    %p195 = scmp.lt.s32.totalorder %s12, 2
    // Predicated region
    $region21: #{res_unit_forward.2} parent=5 // pred_check
      %p196 = pneg %p195
    $region22: #{res_unit_forward.2} parent=5 // pred_check_branch
      %198 = sbr.rel (%p196) target = $region24
    $region23: #{res_unit_forward.2} parent=5 // pred_region
      // Predicated region
      $region25: #{res_unit_forward.2} parent=23 // pred_check
        %p199 = pneg %p46
      $region26: #{res_unit_forward.2} parent=23 // pred_check_branch
        %201 = sbr.rel (%p199) target = $region28
      $region27: #{res_unit_forward.2} parent=23 // pred_region
        %s202 = smul.u32 32, %s20
        %p203 = scmp.lt.s32.totalorder %s19, 1
        %s204 = scalar_select %p203, %s19, 1
        %p205 = scmp.lt.s32.totalorder %s202, 31
        %s206 = scalar_select %p205, %s202, 31
        %s207 = smul.addr %s204, 32
        %s208 = sadd.s32 %s206, %s207
        %s209 = smul.addr %s208, 4
        %s210 = scalar_lea.vmem %s0, %s209
        %s211 = smul.u32 32, %s20
      $region28: #{res_unit_forward.2} parent=23 // pred_fallthru
        _
    $region24: #{res_unit_forward.2} parent=5 // pred_fallthru
      _
    %p212 = scmp.le.s32.totalorder 1, %s12
    %p213 = scmp.lt.s32.totalorder %s12, 3
    %p214 = pnand %p212, %p213
    %p215 = pneg %p214
    // Predicated region
    $region29: #{res_unit_forward.2} parent=5 // pred_check
      _
    $region30: #{res_unit_forward.2} parent=5 // pred_check_branch
      %217 = sbr.rel (%p214) target = $region32
    $region31: #{res_unit_forward.2} parent=5 // pred_region
      %s218 = ssub.s32 %s12, 1
      %s219 = smul.u32 32, %s22
      %p220 = scmp.lt.s32.totalorder %s21, 1
      %s221 = scalar_select %p220, %s21, 1
      %p222 = scmp.lt.s32.totalorder %s219, 31
      %s223 = scalar_select %p222, %s219, 31
      %s224 = smul.addr %s221, 32
      %s225 = sadd.s32 %s223, %s224
      %s226 = smul.addr %s225, 4
      %s227 = scalar_lea.vmem %s0, %s226
      %p228 = pneg %p52
      %p229 = pneg %p49
      %p230 = pneg %p73
      %p231 = pneg %p70
      %p232 = pneg %p94
      %p233 = pneg %p91
      %p234 = pneg %p122
      %p235 = pneg %p119
      %s236 = smul.u32 32, %s22
      %p237 = scmp.lt.s32.totalorder %s21, 1
      %s238 = scalar_select %p237, %s21, 1
      %p239 = scmp.lt.s32.totalorder %s236, 31
      %s240 = scalar_select %p239, %s236, 31
      %s241 = smul.addr %s238, 32
      %s242 = sadd.s32 %s240, %s241
      %s243 = smul.addr %s242, 8
      %s244 = scalar_lea.vmem %s3, %s243
      %p245 = pneg %p148
      %p246 = pneg %p145
      %p247 = scmp.lt.s32.totalorder %s21, 1
      %s248 = scalar_select %p247, %s21, 1
      %s249 = scalar_lea.vmem %s4, %s248
      %p250 = pneg %p174
      %p251 = pneg %p171
      %p252 = scmp.lt.s32.totalorder %s21, 1
      %s253 = scalar_select %p252, %s21, 1
      %s254 = scalar_lea.vmem %s5, %s253
      %s255 = smul.u32 32, %s22
      %p256 = scmp.lt.s32.totalorder %s21, 1
      %s257 = scalar_select %p256, %s21, 1
      %p258 = scmp.lt.s32.totalorder %s255, 31
      %s259 = scalar_select %p258, %s255, 31
      %s260 = smul.addr %s257, 32
      %s261 = sadd.s32 %s259, %s260
      %s262 = smul.addr %s261, 4
      %s263 = scalar_lea.vmem %s0, %s262
      %s264 = smul.u32 32, %s22
      %s265 = smul.u32 32, %s22
      %p266 = scmp.lt.s32.totalorder %s21, 1
      %s267 = scalar_select %p266, %s21, 1
      %p268 = scmp.lt.s32.totalorder %s265, 31
      %s269 = scalar_select %p268, %s265, 31
      %s270 = smul.addr %s267, 32
      %s271 = sadd.s32 %s269, %s270
      %s272 = smul.addr %s271, 8
      %s273 = scalar_lea.vmem %s3, %s272
      %s274 = smul.u32 32, %s22
      %p275 = scmp.lt.s32.totalorder %s21, 1
      %s276 = scalar_select %p275, %s21, 1
      %s277 = scalar_lea.vmem %s4, %s276
      %p278 = scmp.lt.s32.totalorder %s21, 1
      %s279 = scalar_select %p278, %s21, 1
      %s280 = scalar_lea.vmem %s5, %s279
      %p282 = scmp.eq.s32.totalorder %s22, 0
      // Predicated region
      $region33: #{res_unit_forward.2} parent=31 // pred_check
        %p283 = pneg %p282
      $region34: #{res_unit_forward.2} parent=31 // pred_check_branch
        %285 = sbr.rel (%p283) target = $region36
      $region35: #{res_unit_forward.2} parent=31 // pred_region
        %286 = vst [vmem:[%s277] sm:$0x1] 0.0
        %287 = vst [vmem:[%s280] sm:$0x1] 0.0
      $region36: #{res_unit_forward.2} parent=31 // pred_fallthru
        _
      %v288 = vld [vmem:[%s263] sm:$0xf]
      %v289 = vld [vmem:[%s263 + $0x4] sm:$0xf]
      %v290 = vld [vmem:[%s263 + $0x8] sm:$0xf]
      %v291 = vld [vmem:[%s263 + $0xc] sm:$0xf]
      %v292 = vld [vmem:[%s263 + $0x10] sm:$0xf]
      %v293 = vld [vmem:[%s263 + $0x14] sm:$0xf]
      %v294 = vld [vmem:[%s263 + $0x18] sm:$0xf]
      %v295 = vld [vmem:[%s263 + $0x1c] sm:$0xf]
      %v296 = vld [vmem:[%s263 + $0x20] sm:$0xf]
      %v297 = vld [vmem:[%s263 + $0x24] sm:$0xf]
      %v298 = vld [vmem:[%s263 + $0x28] sm:$0xf]
      %v299 = vld [vmem:[%s263 + $0x2c] sm:$0xf]
      %v300 = vld [vmem:[%s263 + $0x30] sm:$0xf]
      %v301 = vld [vmem:[%s263 + $0x34] sm:$0xf]
      %v302 = vld [vmem:[%s263 + $0x38] sm:$0xf]
      %v303 = vld [vmem:[%s263 + $0x3c] sm:$0xf]
      %v304 = vld [vmem:[%s263 + $0x40] sm:$0xf]
      %v305 = vld [vmem:[%s263 + $0x44] sm:$0xf]
      %v306 = vld [vmem:[%s263 + $0x48] sm:$0xf]
      %v307 = vld [vmem:[%s263 + $0x4c] sm:$0xf]
      %v308 = vld [vmem:[%s263 + $0x50] sm:$0xf]
      %v309 = vld [vmem:[%s263 + $0x54] sm:$0xf]
      %v310 = vld [vmem:[%s263 + $0x58] sm:$0xf]
      %v311 = vld [vmem:[%s263 + $0x5c] sm:$0xf]
      %v312 = vld [vmem:[%s263 + $0x60] sm:$0xf]
      %v313 = vld [vmem:[%s263 + $0x64] sm:$0xf]
      %v314 = vld [vmem:[%s263 + $0x68] sm:$0xf]
      %v315 = vld [vmem:[%s263 + $0x6c] sm:$0xf]
      %v316 = vld [vmem:[%s263 + $0x70] sm:$0xf]
      %v317 = vld [vmem:[%s263 + $0x74] sm:$0xf]
      %v318 = vld [vmem:[%s263 + $0x78] sm:$0xf]
      %v319 = vld [vmem:[%s263 + $0x7c] sm:$0xf]
      %v320 = vld [vmem:[%s1] sm:$0xf]
      %v321 = vld [vmem:[%s1 + $0x4] sm:$0xf]
      %v322 = vld [vmem:[%s1 + $0x8] sm:$0xf]
      %v323 = vld [vmem:[%s1 + $0xc] sm:$0xf]
      %v324 = vld [vmem:[%s1 + $0x10] sm:$0x3]
      %v325 = vld [vmem:[%s2] sm:$0x1]
      %v327 = vperm.slane %v325, 0
      %v361 = vunpack.c.l.b16 %v288
      %v362 = vunpack.c.l.b16 %v289
      %v363 = vunpack.c.l.b16 %v290
      %v364 = vunpack.c.l.b16 %v291
      %v365 = vunpack.c.l.b16 %v292
      %v366 = vunpack.c.l.b16 %v293
      %v367 = vunpack.c.l.b16 %v294
      %v368 = vunpack.c.l.b16 %v295
      %v369 = vunpack.c.l.b16 %v296
      %v370 = vunpack.c.l.b16 %v297
      %v371 = vunpack.c.l.b16 %v298
      %v372 = vunpack.c.l.b16 %v299
      %v373 = vunpack.c.l.b16 %v300
      %v374 = vunpack.c.l.b16 %v301
      %v375 = vunpack.c.l.b16 %v302
      %v376 = vunpack.c.l.b16 %v303
      %v377 = vunpack.c.l.b16 %v304
      %v378 = vunpack.c.l.b16 %v305
      %v379 = vunpack.c.l.b16 %v306
      %v380 = vunpack.c.l.b16 %v307
      %v381 = vunpack.c.l.b16 %v308
      %v382 = vunpack.c.l.b16 %v309
      %v383 = vunpack.c.l.b16 %v310
      %v384 = vunpack.c.l.b16 %v311
      %v385 = vunpack.c.l.b16 %v312
      %v386 = vunpack.c.l.b16 %v313
      %v387 = vunpack.c.l.b16 %v314
      %v388 = vunpack.c.l.b16 %v315
      %v389 = vunpack.c.l.b16 %v316
      %v390 = vunpack.c.l.b16 %v317
      %v391 = vunpack.c.l.b16 %v318
      %v392 = vunpack.c.l.b16 %v319
      %v393 = vpack.c.b16 %v362, %v361
      %v394 = vpack.c.b16 %v364, %v363
      %v395 = vpack.c.b16 %v366, %v365
      %v396 = vpack.c.b16 %v368, %v367
      %v397 = vpack.c.b16 %v370, %v369
      %v398 = vpack.c.b16 %v372, %v371
      %v399 = vpack.c.b16 %v374, %v373
      %v400 = vpack.c.b16 %v376, %v375
      %v401 = vpack.c.b16 %v378, %v377
      %v402 = vpack.c.b16 %v380, %v379
      %v403 = vpack.c.b16 %v382, %v381
      %v404 = vpack.c.b16 %v384, %v383
      %v405 = vpack.c.b16 %v386, %v385
      %v406 = vpack.c.b16 %v388, %v387
      %v407 = vpack.c.b16 %v390, %v389
      %v408 = vpack.c.b16 %v392, %v391
      %v414 = vunpack.c.l.b16 %v320
      %v415 = vunpack.c.l.b16 %v321
      %v416 = vunpack.c.l.b16 %v322
      %v417 = vunpack.c.l.b16 %v323
      %v418 = vunpack.c.l.b16 %v324
      %v419 = vpack.c.b16 %v415, %v414
      %v420 = vpack.c.b16 %v417, %v416
      %v421 = vpack.c.b16 %v418, %v418
      %vm424 = vcmask 293888
      %v426 = vsel %vm424, %v393, 0
      %v429 = vsel %vm424, %v394, 0
      %v432 = vsel %vm424, %v395, 0
      %v435 = vsel %vm424, %v396, 0
      %v438 = vsel %vm424, %v397, 0
      %v441 = vsel %vm424, %v398, 0
      %v444 = vsel %vm424, %v399, 0
      %v447 = vsel %vm424, %v400, 0
      %v450 = vsel %vm424, %v401, 0
      %v453 = vsel %vm424, %v402, 0
      %v456 = vsel %vm424, %v403, 0
      %v459 = vsel %vm424, %v404, 0
      %v462 = vsel %vm424, %v405, 0
      %v465 = vsel %vm424, %v406, 0
      %v468 = vsel %vm424, %v407, 0
      %v471 = vsel %vm424, %v408, 0
      %vm473 = vcmask 1041408
      %v475 = vsel %vm473, %v421, 0
      %477 = vmatpush.bf16.msra.mxu0 0
      %478 = vmatpush.bf16.msra.mxu0 0
      %479 = vmatpush.bf16.msra.mxu0 0
      %480 = vmatpush.bf16.msra.mxu0 0
      %481 = vmatpush.bf16.msra.mxu0 0
      %482 = vmatpush.bf16.msra.mxu0 %v475
      %483 = vmatpush.bf16.msra.mxu0 %v420
      %484 = vmatpush.bf16.msra.mxu0 %v419
      %485 = vmatmul.bf16.gmra.mxu0 %v426
      %v486 = vpop.f32.mrf.mxu0
      %v487 = vadd.f32 %v327, %v486
      %v488 = vpop.f32.mrf.mxu0
      %v489 = vadd.f32 %v327, %v488
      %490 = vmatmul.bf16.gmra.mxu0 %v429
      %v491 = vpop.f32.mrf.mxu0
      %v492 = vadd.f32 %v327, %v491
      %v493 = vpop.f32.mrf.mxu0
      %v494 = vadd.f32 %v327, %v493
      %495 = vmatmul.bf16.gmra.mxu0 %v432
      %v496 = vpop.f32.mrf.mxu0
      %v497 = vadd.f32 %v327, %v496
      %v498 = vpop.f32.mrf.mxu0
      %v499 = vadd.f32 %v327, %v498
      %500 = vmatmul.bf16.gmra.mxu0 %v435
      %v501 = vpop.f32.mrf.mxu0
      %v502 = vadd.f32 %v327, %v501
      %v503 = vpop.f32.mrf.mxu0
      %v504 = vadd.f32 %v327, %v503
      %505 = vmatmul.bf16.gmra.mxu0 %v438
      %v506 = vpop.f32.mrf.mxu0
      %v507 = vadd.f32 %v327, %v506
      %v508 = vpop.f32.mrf.mxu0
      %v509 = vadd.f32 %v327, %v508
      %510 = vmatmul.bf16.gmra.mxu0 %v441
      %v511 = vpop.f32.mrf.mxu0
      %v512 = vadd.f32 %v327, %v511
      %v513 = vpop.f32.mrf.mxu0
      %v514 = vadd.f32 %v327, %v513
      %515 = vmatmul.bf16.gmra.mxu0 %v444
      %v516 = vpop.f32.mrf.mxu0
      %v517 = vadd.f32 %v327, %v516
      %v518 = vpop.f32.mrf.mxu0
      %v519 = vadd.f32 %v327, %v518
      %520 = vmatmul.bf16.gmra.mxu0 %v447
      %v521 = vpop.f32.mrf.mxu0
      %v522 = vadd.f32 %v327, %v521
      %v523 = vpop.f32.mrf.mxu0
      %v524 = vadd.f32 %v327, %v523
      %525 = vmatmul.bf16.gmra.mxu0 %v450
      %v526 = vpop.f32.mrf.mxu0
      %v527 = vadd.f32 %v327, %v526
      %v528 = vpop.f32.mrf.mxu0
      %v529 = vadd.f32 %v327, %v528
      %530 = vmatmul.bf16.gmra.mxu0 %v453
      %v531 = vpop.f32.mrf.mxu0
      %v532 = vadd.f32 %v327, %v531
      %v533 = vpop.f32.mrf.mxu0
      %v534 = vadd.f32 %v327, %v533
      %535 = vmatmul.bf16.gmra.mxu0 %v456
      %v536 = vpop.f32.mrf.mxu0
      %v537 = vadd.f32 %v327, %v536
      %v538 = vpop.f32.mrf.mxu0
      %v539 = vadd.f32 %v327, %v538
      %540 = vmatmul.bf16.gmra.mxu0 %v459
      %v541 = vpop.f32.mrf.mxu0
      %v542 = vadd.f32 %v327, %v541
      %v543 = vpop.f32.mrf.mxu0
      %v544 = vadd.f32 %v327, %v543
      %545 = vmatmul.bf16.gmra.mxu0 %v462
      %v546 = vpop.f32.mrf.mxu0
      %v547 = vadd.f32 %v327, %v546
      %v548 = vpop.f32.mrf.mxu0
      %v549 = vadd.f32 %v327, %v548
      %550 = vmatmul.bf16.gmra.mxu0 %v465
      %v551 = vpop.f32.mrf.mxu0
      %v552 = vadd.f32 %v327, %v551
      %v553 = vpop.f32.mrf.mxu0
      %v554 = vadd.f32 %v327, %v553
      %555 = vmatmul.bf16.gmra.mxu0 %v468
      %v556 = vpop.f32.mrf.mxu0
      %v557 = vadd.f32 %v327, %v556
      %v558 = vpop.f32.mrf.mxu0
      %v559 = vadd.f32 %v327, %v558
      %560 = vmatmul.bf16.gmra.mxu0 %v471
      %v561 = vpop.f32.mrf.mxu0
      %v562 = vadd.f32 %v327, %v561
      %v563 = vpop.f32.mrf.mxu0
      %v564 = vadd.f32 %v327, %v563
      %565 = vdwg.mxu0
      %566 = vst [vmem:[%s273] sm:$0xff] %v487
      %567 = vst [vmem:[%s273 + $0x8] sm:$0xff] %v489
      %568 = vst [vmem:[%s273 + $0x10] sm:$0xff] %v492
      %569 = vst [vmem:[%s273 + $0x18] sm:$0xff] %v494
      %570 = vst [vmem:[%s273 + $0x20] sm:$0xff] %v497
      %571 = vst [vmem:[%s273 + $0x28] sm:$0xff] %v499
      %572 = vst [vmem:[%s273 + $0x30] sm:$0xff] %v502
      %573 = vst [vmem:[%s273 + $0x38] sm:$0xff] %v504
      %574 = vst [vmem:[%s273 + $0x40] sm:$0xff] %v507
      %575 = vst [vmem:[%s273 + $0x48] sm:$0xff] %v509
      %576 = vst [vmem:[%s273 + $0x50] sm:$0xff] %v512
      %577 = vst [vmem:[%s273 + $0x58] sm:$0xff] %v514
      %578 = vst [vmem:[%s273 + $0x60] sm:$0xff] %v517
      %579 = vst [vmem:[%s273 + $0x68] sm:$0xff] %v519
      %580 = vst [vmem:[%s273 + $0x70] sm:$0xff] %v522
      %581 = vst [vmem:[%s273 + $0x78] sm:$0xff] %v524
      %582 = vst [vmem:[%s273 + $0x80] sm:$0xff] %v527
      %583 = vst [vmem:[%s273 + $0x88] sm:$0xff] %v529
      %584 = vst [vmem:[%s273 + $0x90] sm:$0xff] %v532
      %585 = vst [vmem:[%s273 + $0x98] sm:$0xff] %v534
      %586 = vst [vmem:[%s273 + $0xa0] sm:$0xff] %v537
      %587 = vst [vmem:[%s273 + $0xa8] sm:$0xff] %v539
      %588 = vst [vmem:[%s273 + $0xb0] sm:$0xff] %v542
      %589 = vst [vmem:[%s273 + $0xb8] sm:$0xff] %v544
      %590 = vst [vmem:[%s273 + $0xc0] sm:$0xff] %v547
      %591 = vst [vmem:[%s273 + $0xc8] sm:$0xff] %v549
      %592 = vst [vmem:[%s273 + $0xd0] sm:$0xff] %v552
      %593 = vst [vmem:[%s273 + $0xd8] sm:$0xff] %v554
      %594 = vst [vmem:[%s273 + $0xe0] sm:$0xff] %v557
      %595 = vst [vmem:[%s273 + $0xe8] sm:$0xff] %v559
      %596 = vst [vmem:[%s273 + $0xf0] sm:$0xff] %v562
      %597 = vst [vmem:[%s273 + $0xf8] sm:$0xff] %v564
      %v598 = vld [vmem:[%s277] sm:$0x1]
      %v599 = vadd.f32 %v487, %v489
      %v600 = vadd.f32 %v599, %v492
      %v601 = vadd.f32 %v600, %v494
      %v602 = vadd.f32 %v601, %v497
      %v603 = vadd.f32 %v602, %v499
      %v604 = vadd.f32 %v603, %v502
      %v605 = vadd.f32 %v604, %v504
      %v606 = vadd.f32 %v605, %v507
      %v607 = vadd.f32 %v606, %v509
      %v608 = vadd.f32 %v607, %v512
      %v609 = vadd.f32 %v608, %v514
      %v610 = vadd.f32 %v609, %v517
      %v611 = vadd.f32 %v610, %v519
      %v612 = vadd.f32 %v611, %v522
      %v613 = vadd.f32 %v612, %v524
      %v614 = vadd.f32 %v613, %v527
      %v615 = vadd.f32 %v614, %v529
      %v616 = vadd.f32 %v615, %v532
      %v617 = vadd.f32 %v616, %v534
      %v618 = vadd.f32 %v617, %v537
      %v619 = vadd.f32 %v618, %v539
      %v620 = vadd.f32 %v619, %v542
      %v621 = vadd.f32 %v620, %v544
      %v622 = vadd.f32 %v621, %v547
      %v623 = vadd.f32 %v622, %v549
      %v624 = vadd.f32 %v623, %v552
      %v625 = vadd.f32 %v624, %v554
      %v626 = vadd.f32 %v625, %v557
      %v627 = vadd.f32 %v626, %v559
      %v628 = vadd.f32 %v627, %v562
      %v629 = vadd.f32 %v628, %v564
      %v630 = vrot.slane %v629, 4
      %v631 = vadd.f32 %v629, %v630
      %v632 = vrot.slane %v631, 2
      %v633 = vadd.f32 %v631, %v632
      %v634 = vrot.slane %v633, 1
      %v635 = vadd.f32 %v633, %v634
      %v636 = vadd.f32 %v598, %v635
      %637 = vst [vmem:[%s277] sm:$0x1] %v636
      %v638 = vld [vmem:[%s280] sm:$0x1]
      %v639 = vmul.f32 %v487, %v487
      %v640 = vmul.f32 %v489, %v489
      %v641 = vmul.f32 %v492, %v492
      %v642 = vmul.f32 %v494, %v494
      %v643 = vmul.f32 %v497, %v497
      %v644 = vmul.f32 %v499, %v499
      %v645 = vmul.f32 %v502, %v502
      %v646 = vmul.f32 %v504, %v504
      %v647 = vmul.f32 %v507, %v507
      %v648 = vmul.f32 %v509, %v509
      %v649 = vmul.f32 %v512, %v512
      %v650 = vmul.f32 %v514, %v514
      %v651 = vmul.f32 %v517, %v517
      %v652 = vmul.f32 %v519, %v519
      %v653 = vmul.f32 %v522, %v522
      %v654 = vmul.f32 %v524, %v524
      %v655 = vmul.f32 %v527, %v527
      %v656 = vmul.f32 %v529, %v529
      %v657 = vmul.f32 %v532, %v532
      %v658 = vmul.f32 %v534, %v534
      %v659 = vmul.f32 %v537, %v537
      %v660 = vmul.f32 %v539, %v539
      %v661 = vmul.f32 %v542, %v542
      %v662 = vmul.f32 %v544, %v544
      %v663 = vmul.f32 %v547, %v547
      %v664 = vmul.f32 %v549, %v549
      %v665 = vmul.f32 %v552, %v552
      %v666 = vmul.f32 %v554, %v554
      %v667 = vmul.f32 %v557, %v557
      %v668 = vmul.f32 %v559, %v559
      %v669 = vmul.f32 %v562, %v562
      %v670 = vmul.f32 %v564, %v564
      %v671 = vadd.f32 %v639, %v640
      %v672 = vadd.f32 %v671, %v641
      %v673 = vadd.f32 %v672, %v642
      %v674 = vadd.f32 %v673, %v643
      %v675 = vadd.f32 %v674, %v644
      %v676 = vadd.f32 %v675, %v645
      %v677 = vadd.f32 %v676, %v646
      %v678 = vadd.f32 %v677, %v647
      %v679 = vadd.f32 %v678, %v648
      %v680 = vadd.f32 %v679, %v649
      %v681 = vadd.f32 %v680, %v650
      %v682 = vadd.f32 %v681, %v651
      %v683 = vadd.f32 %v682, %v652
      %v684 = vadd.f32 %v683, %v653
      %v685 = vadd.f32 %v684, %v654
      %v686 = vadd.f32 %v685, %v655
      %v687 = vadd.f32 %v686, %v656
      %v688 = vadd.f32 %v687, %v657
      %v689 = vadd.f32 %v688, %v658
      %v690 = vadd.f32 %v689, %v659
      %v691 = vadd.f32 %v690, %v660
      %v692 = vadd.f32 %v691, %v661
      %v693 = vadd.f32 %v692, %v662
      %v694 = vadd.f32 %v693, %v663
      %v695 = vadd.f32 %v694, %v664
      %v696 = vadd.f32 %v695, %v665
      %v697 = vadd.f32 %v696, %v666
      %v698 = vadd.f32 %v697, %v667
      %v699 = vadd.f32 %v698, %v668
      %v700 = vadd.f32 %v699, %v669
      %v701 = vadd.f32 %v700, %v670
      %v702 = vrot.slane %v701, 4
      %v703 = vadd.f32 %v701, %v702
      %v704 = vrot.slane %v703, 2
      %v705 = vadd.f32 %v703, %v704
      %v706 = vrot.slane %v705, 1
      %v707 = vadd.f32 %v705, %v706
      %v708 = vadd.f32 %v638, %v707
      %709 = vst [vmem:[%s280] sm:$0x1] %v708
      %s710 = smul.u32 32, %s22
      %p711 = scmp.lt.s32.totalorder %s21, 1
      %s712 = scalar_select %p711, %s21, 1
      %p713 = scmp.lt.s32.totalorder %s710, 31
      %s714 = scalar_select %p713, %s710, 31
      %s715 = smul.addr %s712, 32
      %s716 = sadd.s32 %s714, %s715
      %s717 = smul.addr %s716, 8
      %s718 = scalar_lea.vmem %s3, %s717
      %p719 = scmp.lt.s32.totalorder %s21, 1
      %s720 = scalar_select %p719, %s21, 1
      %s721 = scalar_lea.vmem %s4, %s720
      %p722 = scmp.lt.s32.totalorder %s21, 1
      %s723 = scalar_select %p722, %s21, 1
      %s724 = scalar_lea.vmem %s5, %s723
      // Predicated region
      $region37: #{res_unit_forward.2} parent=31 // pred_check
        %p725 = pneg %p119
      $region38: #{res_unit_forward.2} parent=31 // pred_check_branch
        %727 = sbr.rel (%p725) target = $region40
      $region39: #{res_unit_forward.2} parent=31 // pred_region
        %s728 = smul.u32 32, %s22
      $region40: #{res_unit_forward.2} parent=31 // pred_fallthru
        _
      // Predicated region
      $region41: #{res_unit_forward.2} parent=31 // pred_check
        %p729 = pneg %p145
      $region42: #{res_unit_forward.2} parent=31 // pred_check_branch
        %731 = sbr.rel (%p729) target = $region44
      $region43: #{res_unit_forward.2} parent=31 // pred_region
        _
      $region44: #{res_unit_forward.2} parent=31 // pred_fallthru
        _
      // Predicated region
      $region45: #{res_unit_forward.2} parent=31 // pred_check
        %p732 = pneg %p171
      $region46: #{res_unit_forward.2} parent=31 // pred_check_branch
        %734 = sbr.rel (%p732) target = $region48
      $region47: #{res_unit_forward.2} parent=31 // pred_region
        _
      $region48: #{res_unit_forward.2} parent=31 // pred_fallthru
        _
    $region32: #{res_unit_forward.2} parent=5 // pred_fallthru
      _
    %p735 = scmp.le.s32.totalorder 2, %s12
    // Predicated region
    $region49: #{res_unit_forward.2} parent=5 // pred_check
      %p736 = pneg %p735
    $region50: #{res_unit_forward.2} parent=5 // pred_check_branch
      %738 = sbr.rel (%p736) target = $region52
    $region51: #{res_unit_forward.2} parent=5 // pred_region
      %s739 = ssub.s32 %s12, 2
      // Predicated region
      $region53: #{res_unit_forward.2} parent=51 // pred_check
        %p740 = pneg %p125
      $region54: #{res_unit_forward.2} parent=51 // pred_check_branch
        %742 = sbr.rel (%p740) target = $region56
      $region55: #{res_unit_forward.2} parent=51 // pred_region
        %s743 = smul.u32 32, %s24
        %p744 = scmp.lt.s32.totalorder %s23, 1
        %s745 = scalar_select %p744, %s23, 1
        %p746 = scmp.lt.s32.totalorder %s743, 31
        %s747 = scalar_select %p746, %s743, 31
        %s748 = smul.addr %s745, 32
        %s749 = sadd.s32 %s747, %s748
        %s750 = smul.addr %s749, 8
        %s751 = scalar_lea.vmem %s3, %s750
      $region56: #{res_unit_forward.2} parent=51 // pred_fallthru
        _
      // Predicated region
      $region57: #{res_unit_forward.2} parent=51 // pred_check
        %p752 = pneg %p151
      $region58: #{res_unit_forward.2} parent=51 // pred_check_branch
        %754 = sbr.rel (%p752) target = $region60
      $region59: #{res_unit_forward.2} parent=51 // pred_region
        %p755 = scmp.lt.s32.totalorder %s23, 1
        %s756 = scalar_select %p755, %s23, 1
        %s757 = scalar_lea.vmem %s4, %s756
      $region60: #{res_unit_forward.2} parent=51 // pred_fallthru
        _
      // Predicated region
      $region61: #{res_unit_forward.2} parent=51 // pred_check
        %p758 = pneg %p177
      $region62: #{res_unit_forward.2} parent=51 // pred_check_branch
        %760 = sbr.rel (%p758) target = $region64
      $region63: #{res_unit_forward.2} parent=51 // pred_region
        %p761 = scmp.lt.s32.totalorder %s23, 1
        %s762 = scalar_select %p761, %s23, 1
        %s763 = scalar_lea.vmem %s5, %s762
      $region64: #{res_unit_forward.2} parent=51 // pred_fallthru
        _
    $region52: #{res_unit_forward.2} parent=5 // pred_fallthru
      _
  $region6: #{res_unit_forward.2} parent=0 // loop_footer
    %s16 = sadd.s32 1, %s12
  $region7: #{res_unit_forward.2} parent=0 // loop_footer_branch
    %11 = sbr.rel target = $region3
  $region8: #{res_unit_forward.2} parent=0 // loop_exit
    _

// kernel: res_unit_forward.3
$region0: #{res_unit_forward.3}
  #allocation0 [shape = 'u32[]', space=smem, size = 0x4, offset = 0x4, fixed_abs, tag = 'smem constant byte address 0x4 - core index']
  #allocation1 [shape = 'u32[72,128]{1,0:T(1,128)}', space=vmem, size = 0x9000, scoped, tag = 'internal scratch']
  %s0 = inlined_call_operand.vmem [shape: bf16[2,256,288], index: 0, kind: input, shape index: {}]
  %s1 = inlined_call_operand.vmem [shape: bf16[288,128], index: 1, kind: input, shape index: {}]
  %s2 = inlined_call_operand.vmem [shape: f32[1,128], index: 2, kind: input, shape index: {}]
  %s3 = inlined_call_operand.vmem [shape: f32[2,256,128], index: 3, kind: output, shape index: {0}]
  %s4 = inlined_call_operand.vmem [shape: f32[2,1,128], index: 4, kind: output, shape index: {1}]
  %s5 = inlined_call_operand.vmem [shape: f32[2,1,128], index: 5, kind: output, shape index: {2}]
  %6 = xla_tuple %s3, %s4, %s5
  %s7 = sld [smem:[#allocation0]]
  $region65: #{res_unit_forward.3} parent=0
    _
  %s9 = ssub.s32 1, %s7
  %s10 = scalar_select 0, %s9, %s7
  loop: start=0, step=1, limit=4
  $region2: #{res_unit_forward.3} parent=0 // loop_pre_header
    _
  $region3: #{res_unit_forward.3} parent=0 // loop_header
    %s12 = sphi 0, %s16
    %p13 = scmp.ge.s32.totalorder %s12, 4
    %s19 = sphi 0, %s31
    %s20 = sphi 0, %s27
    %s21 = sphi 0, %s19
    %s22 = sphi 0, %s20
    %s23 = sphi 0, %s21
    %s24 = sphi 0, %s22
    %s36 = sphi 0, %s38
    %s39 = sphi 0, %s36
    %s40 = sphi 0, %s39
    %s56 = sphi 0, %s40
    %s60 = sphi 0, %s60
    %s62 = sphi 0, %s60
    %s63 = sphi 0, %s62
    %s77 = sphi 0, %s63
    %s81 = sphi 0, %s81
    %s83 = sphi 0, %s81
    %s84 = sphi 0, %s83
    %s98 = sphi 0, %s84
    %s106 = sphi 0, %s108
    %s109 = sphi 0, %s106
    %s110 = sphi 0, %s109
    %s126 = sphi 0, %s110
    %s132 = sphi 0, %s134
    %s135 = sphi 0, %s132
    %s136 = sphi 0, %s135
    %s152 = sphi 0, %s136
    %s158 = sphi 0, %s160
    %s161 = sphi 0, %s158
    %s162 = sphi 0, %s161
    %s178 = sphi 0, %s162
  $region4: #{res_unit_forward.3} parent=0 // loop_header_branch
    %15 = sbr.rel (%p13) target = $region8
  $region5: #{res_unit_forward.3} parent=0 // loop_body
    %s17 = ssub.s32 %s12, 1
    %s18 = ssub.s32 %s12, 2
    %s25 = sadd.s32 1, %s20
    %p26 = scmp.ge.s32.totalorder %s25, 1
    %s27 = scalar_select %p26, 0, %s25
    %s28 = sadd.s32 1, %s19
    %s29 = scalar_select %p26, %s28, %s19
    %p30 = scmp.ge.s32.totalorder %s29, 2
    %s31 = scalar_select %p30, 0, %s29
    %s32 = ssub.s32 %s19, %s31
    %s33 = ssub.s32 %s20, %s27
    %s34 = sor.u32 %s32, %s33
    %p35 = scmp.eq.s32.totalorder %s34, 0
    %s37 = sadd.s32 %s36, 1
    %s38 = scalar_select %p35, %s36, %s37
    %p41 = pneg %p35
    %p42 = scmp.eq.s32.totalorder %s12, 1
    %p43 = por %p41, %p42
    %p44 = scmp.ne.s32.totalorder %s36, %s39
    %p45 = scmp.eq.s32.totalorder %s12, 0
    %p46 = por %p44, %p45
    %p47 = scmp.ne.s32.totalorder %s36, %s39
    %p48 = scmp.eq.s32.totalorder %s17, 1
    %p49 = por %p47, %p48
    %p50 = scmp.ne.s32.totalorder %s39, %s40
    %p51 = scmp.eq.s32.totalorder %s17, 0
    %p52 = por %p50, %p51
    %p53 = scmp.ne.s32.totalorder %s39, %s40
    %p54 = scmp.eq.s32.totalorder %s18, 1
    %p55 = por %p53, %p54
    %p57 = scmp.ne.s32.totalorder %s40, %s56
    %p58 = scmp.eq.s32.totalorder %s18, 0
    %p59 = por %p57, %p58
    %s61 = sadd.s32 %s60, 1
    %p64 = scmp.eq.s32.totalorder %s12, 1
    %p65 = scmp.ne.s32.totalorder %s60, %s62
    %p66 = scmp.eq.s32.totalorder %s12, 0
    %p67 = por %p65, %p66
    %p68 = scmp.ne.s32.totalorder %s60, %s62
    %p69 = scmp.eq.s32.totalorder %s17, 1
    %p70 = por %p68, %p69
    %p71 = scmp.ne.s32.totalorder %s62, %s63
    %p72 = scmp.eq.s32.totalorder %s17, 0
    %p73 = por %p71, %p72
    %p74 = scmp.ne.s32.totalorder %s62, %s63
    %p75 = scmp.eq.s32.totalorder %s18, 1
    %p76 = por %p74, %p75
    %p78 = scmp.ne.s32.totalorder %s63, %s77
    %p79 = scmp.eq.s32.totalorder %s18, 0
    %p80 = por %p78, %p79
    %s82 = sadd.s32 %s81, 1
    %p85 = scmp.eq.s32.totalorder %s12, 1
    %p86 = scmp.ne.s32.totalorder %s81, %s83
    %p87 = scmp.eq.s32.totalorder %s12, 0
    %p88 = por %p86, %p87
    %p89 = scmp.ne.s32.totalorder %s81, %s83
    %p90 = scmp.eq.s32.totalorder %s17, 1
    %p91 = por %p89, %p90
    %p92 = scmp.ne.s32.totalorder %s83, %s84
    %p93 = scmp.eq.s32.totalorder %s17, 0
    %p94 = por %p92, %p93
    %p95 = scmp.ne.s32.totalorder %s83, %s84
    %p96 = scmp.eq.s32.totalorder %s18, 1
    %p97 = por %p95, %p96
    %p99 = scmp.ne.s32.totalorder %s84, %s98
    %p100 = scmp.eq.s32.totalorder %s18, 0
    %p101 = por %p99, %p100
    %s102 = ssub.s32 %s19, %s31
    %s103 = ssub.s32 %s20, %s27
    %s104 = sor.u32 %s102, %s103
    %p105 = scmp.eq.s32.totalorder %s104, 0
    %s107 = sadd.s32 %s106, 1
    %s108 = scalar_select %p105, %s106, %s107
    %p111 = pneg %p105
    %p112 = scmp.eq.s32.totalorder %s12, 1
    %p113 = por %p111, %p112
    %p114 = scmp.ne.s32.totalorder %s106, %s109
    %p115 = scmp.eq.s32.totalorder %s12, 0
    %p116 = por %p114, %p115
    %p117 = scmp.ne.s32.totalorder %s106, %s109
    %p118 = scmp.eq.s32.totalorder %s17, 1
    %p119 = por %p117, %p118
    %p120 = scmp.ne.s32.totalorder %s109, %s110
    %p121 = scmp.eq.s32.totalorder %s17, 0
    %p122 = por %p120, %p121
    %p123 = scmp.ne.s32.totalorder %s109, %s110
    %p124 = scmp.eq.s32.totalorder %s18, 1
    %p125 = por %p123, %p124
    %p127 = scmp.ne.s32.totalorder %s110, %s126
    %p128 = scmp.eq.s32.totalorder %s18, 0
    %p129 = por %p127, %p128
    %s130 = ssub.s32 %s19, %s31
    %p131 = scmp.eq.s32.totalorder %s130, 0
    %s133 = sadd.s32 %s132, 1
    %s134 = scalar_select %p131, %s132, %s133
    %p137 = pneg %p131
    %p138 = scmp.eq.s32.totalorder %s12, 1
    %p139 = por %p137, %p138
    %p140 = scmp.ne.s32.totalorder %s132, %s135
    %p141 = scmp.eq.s32.totalorder %s12, 0
    %p142 = por %p140, %p141
    %p143 = scmp.ne.s32.totalorder %s132, %s135
    %p144 = scmp.eq.s32.totalorder %s17, 1
    %p145 = por %p143, %p144
    %p146 = scmp.ne.s32.totalorder %s135, %s136
    %p147 = scmp.eq.s32.totalorder %s17, 0
    %p148 = por %p146, %p147
    %p149 = scmp.ne.s32.totalorder %s135, %s136
    %p150 = scmp.eq.s32.totalorder %s18, 1
    %p151 = por %p149, %p150
    %p153 = scmp.ne.s32.totalorder %s136, %s152
    %p154 = scmp.eq.s32.totalorder %s18, 0
    %p155 = por %p153, %p154
    %s156 = ssub.s32 %s19, %s31
    %p157 = scmp.eq.s32.totalorder %s156, 0
    %s159 = sadd.s32 %s158, 1
    %s160 = scalar_select %p157, %s158, %s159
    %p163 = pneg %p157
    %p164 = scmp.eq.s32.totalorder %s12, 1
    %p165 = por %p163, %p164
    %p166 = scmp.ne.s32.totalorder %s158, %s161
    %p167 = scmp.eq.s32.totalorder %s12, 0
    %p168 = por %p166, %p167
    %p169 = scmp.ne.s32.totalorder %s158, %s161
    %p170 = scmp.eq.s32.totalorder %s17, 1
    %p171 = por %p169, %p170
    %p172 = scmp.ne.s32.totalorder %s161, %s162
    %p173 = scmp.eq.s32.totalorder %s17, 0
    %p174 = por %p172, %p173
    %p175 = scmp.ne.s32.totalorder %s161, %s162
    %p176 = scmp.eq.s32.totalorder %s18, 1
    %p177 = por %p175, %p176
    %p179 = scmp.ne.s32.totalorder %s162, %s178
    %p180 = scmp.eq.s32.totalorder %s18, 0
    %p181 = por %p179, %p180
    %p182 = scmp.le.s32.totalorder 1, %s12
    %p183 = scmp.lt.s32.totalorder %s12, 3
    %p184 = pnand %p182, %p183
    %p185 = pneg %p184
    // Predicated region
    $region9: #{res_unit_forward.3} parent=5 // pred_check
      _
    $region10: #{res_unit_forward.3} parent=5 // pred_check_branch
      %187 = sbr.rel (%p184) target = $region12
    $region11: #{res_unit_forward.3} parent=5 // pred_region
      %s188 = ssub.s32 %s12, 1
      // Predicated region
      $region13: #{res_unit_forward.3} parent=11 // pred_check
        %p189 = pneg %p73
      $region14: #{res_unit_forward.3} parent=11 // pred_check_branch
        %191 = sbr.rel (%p189) target = $region16
      $region15: #{res_unit_forward.3} parent=11 // pred_region
        _
      $region16: #{res_unit_forward.3} parent=11 // pred_fallthru
        _
      // Predicated region
      $region17: #{res_unit_forward.3} parent=11 // pred_check
        %p192 = pneg %p94
      $region18: #{res_unit_forward.3} parent=11 // pred_check_branch
        %194 = sbr.rel (%p192) target = $region20
      $region19: #{res_unit_forward.3} parent=11 // pred_region
        _
      $region20: #{res_unit_forward.3} parent=11 // pred_fallthru
        _
    $region12: #{res_unit_forward.3} parent=5 // pred_fallthru
      _
    %p195 = scmp.lt.s32.totalorder %s12, 2
    // Predicated region
    $region21: #{res_unit_forward.3} parent=5 // pred_check
      %p196 = pneg %p195
    $region22: #{res_unit_forward.3} parent=5 // pred_check_branch
      %198 = sbr.rel (%p196) target = $region24
    $region23: #{res_unit_forward.3} parent=5 // pred_region
      // Predicated region
      $region25: #{res_unit_forward.3} parent=23 // pred_check
        %p199 = pneg %p46
      $region26: #{res_unit_forward.3} parent=23 // pred_check_branch
        %201 = sbr.rel (%p199) target = $region28
      $region27: #{res_unit_forward.3} parent=23 // pred_region
        %s202 = smul.u32 32, %s20
        %p203 = scmp.lt.s32.totalorder %s19, 1
        %s204 = scalar_select %p203, %s19, 1
        %p205 = scmp.lt.s32.totalorder %s202, 31
        %s206 = scalar_select %p205, %s202, 31
        %s207 = smul.addr %s206, 3
        %s208 = smul.addr %s204, 96
        %s209 = sadd.s32 %s207, %s208
        %s210 = smul.addr %s209, 4
        %s211 = scalar_lea.vmem %s0, %s210
        %s212 = smul.u32 32, %s20
      $region28: #{res_unit_forward.3} parent=23 // pred_fallthru
        _
    $region24: #{res_unit_forward.3} parent=5 // pred_fallthru
      _
    %p213 = scmp.le.s32.totalorder 1, %s12
    %p214 = scmp.lt.s32.totalorder %s12, 3
    %p215 = pnand %p213, %p214
    %p216 = pneg %p215
    // Predicated region
    $region29: #{res_unit_forward.3} parent=5 // pred_check
      _
    $region30: #{res_unit_forward.3} parent=5 // pred_check_branch
      %218 = sbr.rel (%p215) target = $region32
    $region31: #{res_unit_forward.3} parent=5 // pred_region
      %s219 = ssub.s32 %s12, 1
      %s220 = smul.u32 32, %s22
      %p221 = scmp.lt.s32.totalorder %s21, 1
      %s222 = scalar_select %p221, %s21, 1
      %p223 = scmp.lt.s32.totalorder %s220, 31
      %s224 = scalar_select %p223, %s220, 31
      %s225 = smul.addr %s224, 3
      %s226 = smul.addr %s222, 96
      %s227 = sadd.s32 %s225, %s226
      %s228 = smul.addr %s227, 4
      %s229 = scalar_lea.vmem %s0, %s228
      %p230 = pneg %p52
      %p231 = pneg %p49
      %p232 = pneg %p73
      %p233 = pneg %p70
      %p234 = pneg %p94
      %p235 = pneg %p91
      %p236 = pneg %p122
      %p237 = pneg %p119
      %s238 = smul.u32 32, %s22
      %p239 = scmp.lt.s32.totalorder %s21, 1
      %s240 = scalar_select %p239, %s21, 1
      %p241 = scmp.lt.s32.totalorder %s238, 31
      %s242 = scalar_select %p241, %s238, 31
      %s243 = smul.addr %s240, 32
      %s244 = sadd.s32 %s242, %s243
      %s245 = smul.addr %s244, 8
      %s246 = scalar_lea.vmem %s3, %s245
      %p247 = pneg %p148
      %p248 = pneg %p145
      %p249 = scmp.lt.s32.totalorder %s21, 1
      %s250 = scalar_select %p249, %s21, 1
      %s251 = scalar_lea.vmem %s4, %s250
      %p252 = pneg %p174
      %p253 = pneg %p171
      %p254 = scmp.lt.s32.totalorder %s21, 1
      %s255 = scalar_select %p254, %s21, 1
      %s256 = scalar_lea.vmem %s5, %s255
      %s257 = smul.u32 32, %s22
      %p258 = scmp.lt.s32.totalorder %s21, 1
      %s259 = scalar_select %p258, %s21, 1
      %p260 = scmp.lt.s32.totalorder %s257, 31
      %s261 = scalar_select %p260, %s257, 31
      %s262 = smul.addr %s261, 3
      %s263 = smul.addr %s259, 96
      %s264 = sadd.s32 %s262, %s263
      %s265 = smul.addr %s264, 4
      %s266 = scalar_lea.vmem %s0, %s265
      %s267 = smul.u32 32, %s22
      %s268 = smul.u32 32, %s22
      %p269 = scmp.lt.s32.totalorder %s21, 1
      %s270 = scalar_select %p269, %s21, 1
      %p271 = scmp.lt.s32.totalorder %s268, 31
      %s272 = scalar_select %p271, %s268, 31
      %s273 = smul.addr %s270, 32
      %s274 = sadd.s32 %s272, %s273
      %s275 = smul.addr %s274, 8
      %s276 = scalar_lea.vmem %s3, %s275
      %s277 = smul.u32 32, %s22
      %p278 = scmp.lt.s32.totalorder %s21, 1
      %s279 = scalar_select %p278, %s21, 1
      %s280 = scalar_lea.vmem %s4, %s279
      %p281 = scmp.lt.s32.totalorder %s21, 1
      %s282 = scalar_select %p281, %s21, 1
      %s283 = scalar_lea.vmem %s5, %s282
      %p285 = scmp.eq.s32.totalorder %s22, 0
      // Predicated region
      $region33: #{res_unit_forward.3} parent=31 // pred_check
        %p286 = pneg %p285
      $region34: #{res_unit_forward.3} parent=31 // pred_check_branch
        %288 = sbr.rel (%p286) target = $region36
      $region35: #{res_unit_forward.3} parent=31 // pred_region
        %289 = vst [vmem:[%s280] sm:$0x1] 0.0
        %290 = vst [vmem:[%s283] sm:$0x1] 0.0
      $region36: #{res_unit_forward.3} parent=31 // pred_fallthru
        _
      %v291 = vld [vmem:[%s266] sm:$0xff]
      %v292 = vld [vmem:[%s266 + $0x8] sm:$0xf]
      %v293 = vld [vmem:[%s266 + $0xc] sm:$0xff]
      %v294 = vld [vmem:[%s266 + $0x14] sm:$0xf]
      %v295 = vld [vmem:[%s266 + $0x18] sm:$0xff]
      %v296 = vld [vmem:[%s266 + $0x20] sm:$0xf]
      %v297 = vld [vmem:[%s266 + $0x24] sm:$0xff]
      %v298 = vld [vmem:[%s266 + $0x2c] sm:$0xf]
      %v299 = vld [vmem:[%s266 + $0x30] sm:$0xff]
      %v300 = vld [vmem:[%s266 + $0x38] sm:$0xf]
      %v301 = vld [vmem:[%s266 + $0x3c] sm:$0xff]
      %v302 = vld [vmem:[%s266 + $0x44] sm:$0xf]
      %v303 = vld [vmem:[%s266 + $0x48] sm:$0xff]
      %v304 = vld [vmem:[%s266 + $0x50] sm:$0xf]
      %v305 = vld [vmem:[%s266 + $0x54] sm:$0xff]
      %v306 = vld [vmem:[%s266 + $0x5c] sm:$0xf]
      %v307 = vld [vmem:[%s266 + $0x60] sm:$0xff]
      %v308 = vld [vmem:[%s266 + $0x68] sm:$0xf]
      %v309 = vld [vmem:[%s266 + $0x6c] sm:$0xff]
      %v310 = vld [vmem:[%s266 + $0x74] sm:$0xf]
      %v311 = vld [vmem:[%s266 + $0x78] sm:$0xff]
      %v312 = vld [vmem:[%s266 + $0x80] sm:$0xf]
      %v313 = vld [vmem:[%s266 + $0x84] sm:$0xff]
      %v314 = vld [vmem:[%s266 + $0x8c] sm:$0xf]
      %v315 = vld [vmem:[%s266 + $0x90] sm:$0xff]
      %v316 = vld [vmem:[%s266 + $0x98] sm:$0xf]
      %v317 = vld [vmem:[%s266 + $0x9c] sm:$0xff]
      %v318 = vld [vmem:[%s266 + $0xa4] sm:$0xf]
      %v319 = vld [vmem:[%s266 + $0xa8] sm:$0xff]
      %v320 = vld [vmem:[%s266 + $0xb0] sm:$0xf]
      %v321 = vld [vmem:[%s266 + $0xb4] sm:$0xff]
      %v322 = vld [vmem:[%s266 + $0xbc] sm:$0xf]
      %v323 = vld [vmem:[%s266 + $0xc0] sm:$0xff]
      %v324 = vld [vmem:[%s266 + $0xc8] sm:$0xf]
      %v325 = vld [vmem:[%s266 + $0xcc] sm:$0xff]
      %v326 = vld [vmem:[%s266 + $0xd4] sm:$0xf]
      %v327 = vld [vmem:[%s266 + $0xd8] sm:$0xff]
      %v328 = vld [vmem:[%s266 + $0xe0] sm:$0xf]
      %v329 = vld [vmem:[%s266 + $0xe4] sm:$0xff]
      %v330 = vld [vmem:[%s266 + $0xec] sm:$0xf]
      %v331 = vld [vmem:[%s266 + $0xf0] sm:$0xff]
      %v332 = vld [vmem:[%s266 + $0xf8] sm:$0xf]
      %v333 = vld [vmem:[%s266 + $0xfc] sm:$0xff]
      %v334 = vld [vmem:[%s266 + $0x104] sm:$0xf]
      %v335 = vld [vmem:[%s266 + $0x108] sm:$0xff]
      %v336 = vld [vmem:[%s266 + $0x110] sm:$0xf]
      %v337 = vld [vmem:[%s266 + $0x114] sm:$0xff]
      %v338 = vld [vmem:[%s266 + $0x11c] sm:$0xf]
      %v339 = vld [vmem:[%s266 + $0x120] sm:$0xff]
      %v340 = vld [vmem:[%s266 + $0x128] sm:$0xf]
      %v341 = vld [vmem:[%s266 + $0x12c] sm:$0xff]
      %v342 = vld [vmem:[%s266 + $0x134] sm:$0xf]
      %v343 = vld [vmem:[%s266 + $0x138] sm:$0xff]
      %v344 = vld [vmem:[%s266 + $0x140] sm:$0xf]
      %v345 = vld [vmem:[%s266 + $0x144] sm:$0xff]
      %v346 = vld [vmem:[%s266 + $0x14c] sm:$0xf]
      %v347 = vld [vmem:[%s266 + $0x150] sm:$0xff]
      %v348 = vld [vmem:[%s266 + $0x158] sm:$0xf]
      %v349 = vld [vmem:[%s266 + $0x15c] sm:$0xff]
      %v350 = vld [vmem:[%s266 + $0x164] sm:$0xf]
      %v351 = vld [vmem:[%s266 + $0x168] sm:$0xff]
      %v352 = vld [vmem:[%s266 + $0x170] sm:$0xf]
      %v353 = vld [vmem:[%s266 + $0x174] sm:$0xff]
      %v354 = vld [vmem:[%s266 + $0x17c] sm:$0xf]
      %v355 = vld [vmem:[%s1] sm:$0xf]
      %v356 = vld [vmem:[%s1 + $0x4] sm:$0xf]
      %v357 = vld [vmem:[%s1 + $0x8] sm:$0xf]
      %v358 = vld [vmem:[%s1 + $0xc] sm:$0xf]
      %v359 = vld [vmem:[%s1 + $0x10] sm:$0xf]
      %v360 = vld [vmem:[%s1 + $0x14] sm:$0xf]
      %v361 = vld [vmem:[%s1 + $0x18] sm:$0xf]
      %v362 = vld [vmem:[%s1 + $0x1c] sm:$0xf]
      %v363 = vld [vmem:[%s1 + $0x20] sm:$0xf]
      %v364 = vld [vmem:[%s1 + $0x24] sm:$0xf]
      %v365 = vld [vmem:[%s1 + $0x28] sm:$0xf]
      %v366 = vld [vmem:[%s1 + $0x2c] sm:$0xf]
      %v367 = vld [vmem:[%s1 + $0x30] sm:$0xf]
      %v368 = vld [vmem:[%s1 + $0x34] sm:$0xf]
      %v369 = vld [vmem:[%s1 + $0x38] sm:$0xf]
      %v370 = vld [vmem:[%s1 + $0x3c] sm:$0xf]
      %v371 = vld [vmem:[%s1 + $0x40] sm:$0xf]
      %v372 = vld [vmem:[%s1 + $0x44] sm:$0xf]
      %v373 = vld [vmem:[%s1 + $0x48] sm:$0xf]
      %v374 = vld [vmem:[%s1 + $0x4c] sm:$0xf]
      %v375 = vld [vmem:[%s1 + $0x50] sm:$0xf]
      %v376 = vld [vmem:[%s1 + $0x54] sm:$0xf]
      %v377 = vld [vmem:[%s1 + $0x58] sm:$0xf]
      %v378 = vld [vmem:[%s1 + $0x5c] sm:$0xf]
      %v379 = vld [vmem:[%s1 + $0x60] sm:$0xf]
      %v380 = vld [vmem:[%s1 + $0x64] sm:$0xf]
      %v381 = vld [vmem:[%s1 + $0x68] sm:$0xf]
      %v382 = vld [vmem:[%s1 + $0x6c] sm:$0xf]
      %v383 = vld [vmem:[%s1 + $0x70] sm:$0xf]
      %v384 = vld [vmem:[%s1 + $0x74] sm:$0xf]
      %v385 = vld [vmem:[%s1 + $0x78] sm:$0xf]
      %v386 = vld [vmem:[%s1 + $0x7c] sm:$0xf]
      %v387 = vld [vmem:[%s1 + $0x80] sm:$0xf]
      %v388 = vld [vmem:[%s1 + $0x84] sm:$0xf]
      %v389 = vld [vmem:[%s1 + $0x88] sm:$0xf]
      %v390 = vld [vmem:[%s1 + $0x8c] sm:$0xf]
      %v391 = vld [vmem:[%s2] sm:$0x1]
      %v393 = vperm.slane %v391, 0
      %v459 = vunpack.c.l.b16 %v291
      %v460 = vunpack.c.h.b16 %v291
      %v461 = vunpack.c.l.b16 %v292
      %v462 = vunpack.c.l.b16 %v293
      %v463 = vunpack.c.h.b16 %v293
      %v464 = vunpack.c.l.b16 %v294
      %v465 = vunpack.c.l.b16 %v295
      %v466 = vunpack.c.h.b16 %v295
      %v467 = vunpack.c.l.b16 %v296
      %v468 = vunpack.c.l.b16 %v297
      %v469 = vunpack.c.h.b16 %v297
      %v470 = vunpack.c.l.b16 %v298
      %v471 = vunpack.c.l.b16 %v299
      %v472 = vunpack.c.h.b16 %v299
      %v473 = vunpack.c.l.b16 %v300
      %v474 = vunpack.c.l.b16 %v301
      %v475 = vunpack.c.h.b16 %v301
      %v476 = vunpack.c.l.b16 %v302
      %v477 = vunpack.c.l.b16 %v303
      %v478 = vunpack.c.h.b16 %v303
      %v479 = vunpack.c.l.b16 %v304
      %v480 = vunpack.c.l.b16 %v305
      %v481 = vunpack.c.h.b16 %v305
      %v482 = vunpack.c.l.b16 %v306
      %v483 = vunpack.c.l.b16 %v307
      %v484 = vunpack.c.h.b16 %v307
      %v485 = vunpack.c.l.b16 %v308
      %v486 = vunpack.c.l.b16 %v309
      %v487 = vunpack.c.h.b16 %v309
      %v488 = vunpack.c.l.b16 %v310
      %v489 = vunpack.c.l.b16 %v311
      %v490 = vunpack.c.h.b16 %v311
      %v491 = vunpack.c.l.b16 %v312
      %v492 = vunpack.c.l.b16 %v313
      %v493 = vunpack.c.h.b16 %v313
      %v494 = vunpack.c.l.b16 %v314
      %v495 = vunpack.c.l.b16 %v315
      %v496 = vunpack.c.h.b16 %v315
      %v497 = vunpack.c.l.b16 %v316
      %v498 = vunpack.c.l.b16 %v317
      %v499 = vunpack.c.h.b16 %v317
      %v500 = vunpack.c.l.b16 %v318
      %v501 = vunpack.c.l.b16 %v319
      %v502 = vunpack.c.h.b16 %v319
      %v503 = vunpack.c.l.b16 %v320
      %v504 = vunpack.c.l.b16 %v321
      %v505 = vunpack.c.h.b16 %v321
      %v506 = vunpack.c.l.b16 %v322
      %v507 = vunpack.c.l.b16 %v323
      %v508 = vunpack.c.h.b16 %v323
      %v509 = vunpack.c.l.b16 %v324
      %v510 = vunpack.c.l.b16 %v325
      %v511 = vunpack.c.h.b16 %v325
      %v512 = vunpack.c.l.b16 %v326
      %v513 = vunpack.c.l.b16 %v327
      %v514 = vunpack.c.h.b16 %v327
      %v515 = vunpack.c.l.b16 %v328
      %v516 = vunpack.c.l.b16 %v329
      %v517 = vunpack.c.h.b16 %v329
      %v518 = vunpack.c.l.b16 %v330
      %v519 = vunpack.c.l.b16 %v331
      %v520 = vunpack.c.h.b16 %v331
      %v521 = vunpack.c.l.b16 %v332
      %v522 = vunpack.c.l.b16 %v333
      %v523 = vunpack.c.h.b16 %v333
      %v524 = vunpack.c.l.b16 %v334
      %v525 = vunpack.c.l.b16 %v335
      %v526 = vunpack.c.h.b16 %v335
      %v527 = vunpack.c.l.b16 %v336
      %v528 = vunpack.c.l.b16 %v337
      %v529 = vunpack.c.h.b16 %v337
      %v530 = vunpack.c.l.b16 %v338
      %v531 = vunpack.c.l.b16 %v339
      %v532 = vunpack.c.h.b16 %v339
      %v533 = vunpack.c.l.b16 %v340
      %v534 = vunpack.c.l.b16 %v341
      %v535 = vunpack.c.h.b16 %v341
      %v536 = vunpack.c.l.b16 %v342
      %v537 = vunpack.c.l.b16 %v343
      %v538 = vunpack.c.h.b16 %v343
      %v539 = vunpack.c.l.b16 %v344
      %v540 = vunpack.c.l.b16 %v345
      %v541 = vunpack.c.h.b16 %v345
      %v542 = vunpack.c.l.b16 %v346
      %v543 = vunpack.c.l.b16 %v347
      %v544 = vunpack.c.h.b16 %v347
      %v545 = vunpack.c.l.b16 %v348
      %v546 = vunpack.c.l.b16 %v349
      %v547 = vunpack.c.h.b16 %v349
      %v548 = vunpack.c.l.b16 %v350
      %v549 = vunpack.c.l.b16 %v351
      %v550 = vunpack.c.h.b16 %v351
      %v551 = vunpack.c.l.b16 %v352
      %v552 = vunpack.c.l.b16 %v353
      %v553 = vunpack.c.h.b16 %v353
      %v554 = vunpack.c.l.b16 %v354
      %v555 = vpack.c.b16 %v462, %v459
      %v556 = vpack.c.b16 %v463, %v460
      %v557 = vpack.c.b16 %v464, %v461
      %v558 = vpack.c.b16 %v468, %v465
      %v559 = vpack.c.b16 %v469, %v466
      %v560 = vpack.c.b16 %v470, %v467
      %v561 = vpack.c.b16 %v474, %v471
      %v562 = vpack.c.b16 %v475, %v472
      %v563 = vpack.c.b16 %v476, %v473
      %v564 = vpack.c.b16 %v480, %v477
      %v565 = vpack.c.b16 %v481, %v478
      %v566 = vpack.c.b16 %v482, %v479
      %v567 = vpack.c.b16 %v486, %v483
      %v568 = vpack.c.b16 %v487, %v484
      %v569 = vpack.c.b16 %v488, %v485
      %v570 = vpack.c.b16 %v492, %v489
      %v571 = vpack.c.b16 %v493, %v490
      %v572 = vpack.c.b16 %v494, %v491
      %v573 = vpack.c.b16 %v498, %v495
      %v574 = vpack.c.b16 %v499, %v496
      %v575 = vpack.c.b16 %v500, %v497
      %v576 = vpack.c.b16 %v504, %v501
      %v577 = vpack.c.b16 %v505, %v502
      %v578 = vpack.c.b16 %v506, %v503
      %v579 = vpack.c.b16 %v510, %v507
      %v580 = vpack.c.b16 %v511, %v508
      %v581 = vpack.c.b16 %v512, %v509
      %v582 = vpack.c.b16 %v516, %v513
      %v583 = vpack.c.b16 %v517, %v514
      %v584 = vpack.c.b16 %v518, %v515
      %v585 = vpack.c.b16 %v522, %v519
      %v586 = vpack.c.b16 %v523, %v520
      %v587 = vpack.c.b16 %v524, %v521
      %v588 = vpack.c.b16 %v528, %v525
      %v589 = vpack.c.b16 %v529, %v526
      %v590 = vpack.c.b16 %v530, %v527
      %v591 = vpack.c.b16 %v534, %v531
      %v592 = vpack.c.b16 %v535, %v532
      %v593 = vpack.c.b16 %v536, %v533
      %v594 = vpack.c.b16 %v540, %v537
      %v595 = vpack.c.b16 %v541, %v538
      %v596 = vpack.c.b16 %v542, %v539
      %v597 = vpack.c.b16 %v546, %v543
      %v598 = vpack.c.b16 %v547, %v544
      %v599 = vpack.c.b16 %v548, %v545
      %v600 = vpack.c.b16 %v552, %v549
      %v601 = vpack.c.b16 %v553, %v550
      %v602 = vpack.c.b16 %v554, %v551
      %v671 = vunpack.c.l.b16 %v355
      %v672 = vunpack.c.l.b16 %v356
      %v673 = vunpack.c.l.b16 %v357
      %v674 = vunpack.c.l.b16 %v358
      %v675 = vunpack.c.l.b16 %v359
      %v676 = vunpack.c.l.b16 %v360
      %v677 = vunpack.c.l.b16 %v361
      %v678 = vunpack.c.l.b16 %v362
      %v679 = vunpack.c.l.b16 %v363
      %v680 = vunpack.c.l.b16 %v364
      %v681 = vunpack.c.l.b16 %v365
      %v682 = vunpack.c.l.b16 %v366
      %v683 = vunpack.c.l.b16 %v367
      %v684 = vunpack.c.l.b16 %v368
      %v685 = vunpack.c.l.b16 %v369
      %v686 = vunpack.c.l.b16 %v370
      %v687 = vunpack.c.l.b16 %v371
      %v688 = vunpack.c.l.b16 %v372
      %v689 = vunpack.c.l.b16 %v373
      %v690 = vunpack.c.l.b16 %v374
      %v691 = vunpack.c.l.b16 %v375
      %v692 = vunpack.c.l.b16 %v376
      %v693 = vunpack.c.l.b16 %v377
      %v694 = vunpack.c.l.b16 %v378
      %v695 = vunpack.c.l.b16 %v379
      %v696 = vunpack.c.l.b16 %v380
      %v697 = vunpack.c.l.b16 %v381
      %v698 = vunpack.c.l.b16 %v382
      %v699 = vunpack.c.l.b16 %v383
      %v700 = vunpack.c.l.b16 %v384
      %v701 = vunpack.c.l.b16 %v385
      %v702 = vunpack.c.l.b16 %v386
      %v703 = vunpack.c.l.b16 %v387
      %v704 = vunpack.c.l.b16 %v388
      %v705 = vunpack.c.l.b16 %v389
      %v706 = vunpack.c.l.b16 %v390
      %v707 = vpack.c.b16 %v672, %v671
      %v708 = vpack.c.b16 %v674, %v673
      %v709 = vpack.c.b16 %v676, %v675
      %v710 = vpack.c.b16 %v678, %v677
      %v711 = vpack.c.b16 %v680, %v679
      %v712 = vpack.c.b16 %v682, %v681
      %v713 = vpack.c.b16 %v684, %v683
      %v714 = vpack.c.b16 %v686, %v685
      %v715 = vpack.c.b16 %v688, %v687
      %v716 = vpack.c.b16 %v690, %v689
      %v717 = vpack.c.b16 %v692, %v691
      %v718 = vpack.c.b16 %v694, %v693
      %v719 = vpack.c.b16 %v696, %v695
      %v720 = vpack.c.b16 %v698, %v697
      %v721 = vpack.c.b16 %v700, %v699
      %v722 = vpack.c.b16 %v702, %v701
      %v723 = vpack.c.b16 %v704, %v703
      %v724 = vpack.c.b16 %v706, %v705
      %vm743 = vcmask 261120
      %v745 = vsel %vm743, %v557, 0
      %v748 = vsel %vm743, %v560, 0
      %v751 = vsel %vm743, %v563, 0
      %v754 = vsel %vm743, %v566, 0
      %v757 = vsel %vm743, %v569, 0
      %v760 = vsel %vm743, %v572, 0
      %v763 = vsel %vm743, %v575, 0
      %v766 = vsel %vm743, %v578, 0
      %v769 = vsel %vm743, %v581, 0
      %v772 = vsel %vm743, %v584, 0
      %v775 = vsel %vm743, %v587, 0
      %v778 = vsel %vm743, %v590, 0
      %v781 = vsel %vm743, %v593, 0
      %v784 = vsel %vm743, %v596, 0
      %v787 = vsel %vm743, %v599, 0
      %v790 = vsel %vm743, %v602, 0
      %792 = vmatpush.bf16.msra.mxu0 %v714
      %793 = vmatpush.bf16.msra.mxu0 %v713
      %794 = vmatpush.bf16.msra.mxu0 %v712
      %795 = vmatpush.bf16.msra.mxu0 %v711
      %796 = vmatpush.bf16.msra.mxu0 %v710
      %797 = vmatpush.bf16.msra.mxu0 %v709
      %798 = vmatpush.bf16.msra.mxu0 %v708
      %799 = vmatpush.bf16.msra.mxu0 %v707
      %800 = vmatmul.bf16.gmra.mxu0 %v555
      %v801 = vpop.f32.mrf.mxu0
      %v802 = vadd.f32 %v393, %v801
      %v803 = vpop.f32.mrf.mxu0
      %v804 = vadd.f32 %v393, %v803
      %805 = vmatmul.bf16.gmra.mxu0 %v558
      %v806 = vpop.f32.mrf.mxu0
      %v807 = vadd.f32 %v393, %v806
      %v808 = vpop.f32.mrf.mxu0
      %v809 = vadd.f32 %v393, %v808
      %810 = vmatmul.bf16.gmra.mxu0 %v561
      %v811 = vpop.f32.mrf.mxu0
      %v812 = vadd.f32 %v393, %v811
      %v813 = vpop.f32.mrf.mxu0
      %v814 = vadd.f32 %v393, %v813
      %815 = vmatmul.bf16.gmra.mxu0 %v564
      %v816 = vpop.f32.mrf.mxu0
      %v817 = vadd.f32 %v393, %v816
      %v818 = vpop.f32.mrf.mxu0
      %v819 = vadd.f32 %v393, %v818
      %820 = vmatmul.bf16.gmra.mxu0 %v567
      %v821 = vpop.f32.mrf.mxu0
      %v822 = vadd.f32 %v393, %v821
      %v823 = vpop.f32.mrf.mxu0
      %v824 = vadd.f32 %v393, %v823
      %825 = vmatmul.bf16.gmra.mxu0 %v570
      %v826 = vpop.f32.mrf.mxu0
      %v827 = vadd.f32 %v393, %v826
      %v828 = vpop.f32.mrf.mxu0
      %v829 = vadd.f32 %v393, %v828
      %830 = vmatmul.bf16.gmra.mxu0 %v573
      %v831 = vpop.f32.mrf.mxu0
      %v832 = vadd.f32 %v393, %v831
      %v833 = vpop.f32.mrf.mxu0
      %v834 = vadd.f32 %v393, %v833
      %835 = vmatmul.bf16.gmra.mxu0 %v576
      %v836 = vpop.f32.mrf.mxu0
      %v837 = vadd.f32 %v393, %v836
      %v838 = vpop.f32.mrf.mxu0
      %v839 = vadd.f32 %v393, %v838
      %840 = vmatmul.bf16.gmra.mxu0 %v579
      %v841 = vpop.f32.mrf.mxu0
      %v842 = vadd.f32 %v393, %v841
      %v843 = vpop.f32.mrf.mxu0
      %v844 = vadd.f32 %v393, %v843
      %845 = vmatmul.bf16.gmra.mxu0 %v582
      %v846 = vpop.f32.mrf.mxu0
      %v847 = vadd.f32 %v393, %v846
      %v848 = vpop.f32.mrf.mxu0
      %v849 = vadd.f32 %v393, %v848
      %850 = vmatmul.bf16.gmra.mxu0 %v585
      %v851 = vpop.f32.mrf.mxu0
      %v852 = vadd.f32 %v393, %v851
      %v853 = vpop.f32.mrf.mxu0
      %v854 = vadd.f32 %v393, %v853
      %855 = vmatmul.bf16.gmra.mxu0 %v588
      %v856 = vpop.f32.mrf.mxu0
      %v857 = vadd.f32 %v393, %v856
      %v858 = vpop.f32.mrf.mxu0
      %v859 = vadd.f32 %v393, %v858
      %860 = vmatmul.bf16.gmra.mxu0 %v591
      %v861 = vpop.f32.mrf.mxu0
      %v862 = vadd.f32 %v393, %v861
      %v863 = vpop.f32.mrf.mxu0
      %v864 = vadd.f32 %v393, %v863
      %865 = vmatmul.bf16.gmra.mxu0 %v594
      %v866 = vpop.f32.mrf.mxu0
      %v867 = vadd.f32 %v393, %v866
      %v868 = vpop.f32.mrf.mxu0
      %v869 = vadd.f32 %v393, %v868
      %870 = vmatmul.bf16.gmra.mxu0 %v597
      %v871 = vpop.f32.mrf.mxu0
      %v872 = vadd.f32 %v393, %v871
      %v873 = vpop.f32.mrf.mxu0
      %v874 = vadd.f32 %v393, %v873
      %875 = vmatmul.bf16.gmra.mxu0 %v600
      %v876 = vpop.f32.mrf.mxu0
      %v877 = vadd.f32 %v393, %v876
      %v878 = vpop.f32.mrf.mxu0
      %v879 = vadd.f32 %v393, %v878
      %880 = vdwg.mxu0
      %881 = vmatpush.bf16.msra.mxu0 %v722
      %882 = vmatpush.bf16.msra.mxu0 %v721
      %883 = vmatpush.bf16.msra.mxu0 %v720
      %884 = vmatpush.bf16.msra.mxu0 %v719
      %885 = vmatpush.bf16.msra.mxu0 %v718
      %886 = vmatpush.bf16.msra.mxu0 %v717
      %887 = vmatpush.bf16.msra.mxu0 %v716
      %888 = vmatpush.bf16.msra.mxu0 %v715
      %889 = vmatmul.bf16.gmra.mxu0 %v556
      %v890 = vpop.f32.mrf.mxu0
      %v891 = vadd.f32 %v802, %v890
      %v892 = vpop.f32.mrf.mxu0
      %v893 = vadd.f32 %v804, %v892
      %894 = vmatmul.bf16.gmra.mxu0 %v559
      %v895 = vpop.f32.mrf.mxu0
      %v896 = vadd.f32 %v807, %v895
      %v897 = vpop.f32.mrf.mxu0
      %v898 = vadd.f32 %v809, %v897
      %899 = vmatmul.bf16.gmra.mxu0 %v562
      %v900 = vpop.f32.mrf.mxu0
      %v901 = vadd.f32 %v812, %v900
      %v902 = vpop.f32.mrf.mxu0
      %v903 = vadd.f32 %v814, %v902
      %904 = vmatmul.bf16.gmra.mxu0 %v565
      %v905 = vpop.f32.mrf.mxu0
      %v906 = vadd.f32 %v817, %v905
      %v907 = vpop.f32.mrf.mxu0
      %v908 = vadd.f32 %v819, %v907
      %909 = vmatmul.bf16.gmra.mxu0 %v568
      %v910 = vpop.f32.mrf.mxu0
      %v911 = vadd.f32 %v822, %v910
      %v912 = vpop.f32.mrf.mxu0
      %v913 = vadd.f32 %v824, %v912
      %914 = vmatmul.bf16.gmra.mxu0 %v571
      %v915 = vpop.f32.mrf.mxu0
      %v916 = vadd.f32 %v827, %v915
      %v917 = vpop.f32.mrf.mxu0
      %v918 = vadd.f32 %v829, %v917
      %919 = vmatmul.bf16.gmra.mxu0 %v574
      %v920 = vpop.f32.mrf.mxu0
      %v921 = vadd.f32 %v832, %v920
      %v922 = vpop.f32.mrf.mxu0
      %v923 = vadd.f32 %v834, %v922
      %924 = vmatmul.bf16.gmra.mxu0 %v577
      %v925 = vpop.f32.mrf.mxu0
      %v926 = vadd.f32 %v837, %v925
      %v927 = vpop.f32.mrf.mxu0
      %v928 = vadd.f32 %v839, %v927
      %929 = vmatmul.bf16.gmra.mxu0 %v580
      %v930 = vpop.f32.mrf.mxu0
      %v931 = vadd.f32 %v842, %v930
      %v932 = vpop.f32.mrf.mxu0
      %v933 = vadd.f32 %v844, %v932
      %934 = vmatmul.bf16.gmra.mxu0 %v583
      %v935 = vpop.f32.mrf.mxu0
      %v936 = vadd.f32 %v847, %v935
      %v937 = vpop.f32.mrf.mxu0
      %v938 = vadd.f32 %v849, %v937
      %939 = vmatmul.bf16.gmra.mxu0 %v586
      %v940 = vpop.f32.mrf.mxu0
      %v941 = vadd.f32 %v852, %v940
      %v942 = vpop.f32.mrf.mxu0
      %v943 = vadd.f32 %v854, %v942
      %944 = vmatmul.bf16.gmra.mxu0 %v589
      %v945 = vpop.f32.mrf.mxu0
      %v946 = vadd.f32 %v857, %v945
      %v947 = vpop.f32.mrf.mxu0
      %v948 = vadd.f32 %v859, %v947
      %949 = vmatmul.bf16.gmra.mxu0 %v592
      %v950 = vpop.f32.mrf.mxu0
      %v951 = vadd.f32 %v862, %v950
      %v952 = vpop.f32.mrf.mxu0
      %v953 = vadd.f32 %v864, %v952
      %954 = vmatmul.bf16.gmra.mxu0 %v595
      %v955 = vpop.f32.mrf.mxu0
      %v956 = vadd.f32 %v867, %v955
      %v957 = vpop.f32.mrf.mxu0
      %v958 = vadd.f32 %v869, %v957
      %959 = vmatmul.bf16.gmra.mxu0 %v598
      %v960 = vpop.f32.mrf.mxu0
      %v961 = vadd.f32 %v872, %v960
      %v962 = vpop.f32.mrf.mxu0
      %v963 = vadd.f32 %v874, %v962
      %964 = vmatmul.bf16.gmra.mxu0 %v601
      %v965 = vpop.f32.mrf.mxu0
      %v966 = vadd.f32 %v877, %v965
      %v967 = vpop.f32.mrf.mxu0
      %v968 = vadd.f32 %v879, %v967
      %969 = vdwg.mxu0
      %970 = vmatpush.bf16.msra.mxu0 0
      %971 = vmatpush.bf16.msra.mxu0 0
      %972 = vmatpush.bf16.msra.mxu0 0
      %973 = vmatpush.bf16.msra.mxu0 0
      %974 = vmatpush.bf16.msra.mxu0 0
      %975 = vmatpush.bf16.msra.mxu0 0
      %976 = vmatpush.bf16.msra.mxu0 %v724
      %977 = vmatpush.bf16.msra.mxu0 %v723
      %978 = vmatmul.bf16.gmra.mxu0 %v745
      %v979 = vpop.f32.mrf.mxu0
      %v980 = vadd.f32 %v891, %v979
      %v981 = vpop.f32.mrf.mxu0
      %v982 = vadd.f32 %v893, %v981
      %983 = vmatmul.bf16.gmra.mxu0 %v748
      %v984 = vpop.f32.mrf.mxu0
      %v985 = vadd.f32 %v896, %v984
      %v986 = vpop.f32.mrf.mxu0
      %v987 = vadd.f32 %v898, %v986
      %988 = vmatmul.bf16.gmra.mxu0 %v751
      %v989 = vpop.f32.mrf.mxu0
      %v990 = vadd.f32 %v901, %v989
      %v991 = vpop.f32.mrf.mxu0
      %v992 = vadd.f32 %v903, %v991
      %993 = vmatmul.bf16.gmra.mxu0 %v754
      %v994 = vpop.f32.mrf.mxu0
      %v995 = vadd.f32 %v906, %v994
      %v996 = vpop.f32.mrf.mxu0
      %v997 = vadd.f32 %v908, %v996
      %998 = vmatmul.bf16.gmra.mxu0 %v757
      %v999 = vpop.f32.mrf.mxu0
      %v1000 = vadd.f32 %v911, %v999
      %v1001 = vpop.f32.mrf.mxu0
      %v1002 = vadd.f32 %v913, %v1001
      %1003 = vmatmul.bf16.gmra.mxu0 %v760
      %v1004 = vpop.f32.mrf.mxu0
      %v1005 = vadd.f32 %v916, %v1004
      %v1006 = vpop.f32.mrf.mxu0
      %v1007 = vadd.f32 %v918, %v1006
      %1008 = vmatmul.bf16.gmra.mxu0 %v763
      %v1009 = vpop.f32.mrf.mxu0
      %v1010 = vadd.f32 %v921, %v1009
      %v1011 = vpop.f32.mrf.mxu0
      %v1012 = vadd.f32 %v923, %v1011
      %1013 = vmatmul.bf16.gmra.mxu0 %v766
      %v1014 = vpop.f32.mrf.mxu0
      %v1015 = vadd.f32 %v926, %v1014
      %v1016 = vpop.f32.mrf.mxu0
      %v1017 = vadd.f32 %v928, %v1016
      %1018 = vmatmul.bf16.gmra.mxu0 %v769
      %v1019 = vpop.f32.mrf.mxu0
      %v1020 = vadd.f32 %v931, %v1019
      %v1021 = vpop.f32.mrf.mxu0
      %v1022 = vadd.f32 %v933, %v1021
      %1023 = vmatmul.bf16.gmra.mxu0 %v772
      %v1024 = vpop.f32.mrf.mxu0
      %v1025 = vadd.f32 %v936, %v1024
      %v1026 = vpop.f32.mrf.mxu0
      %v1027 = vadd.f32 %v938, %v1026
      %1028 = vmatmul.bf16.gmra.mxu0 %v775
      %v1029 = vpop.f32.mrf.mxu0
      %v1030 = vadd.f32 %v941, %v1029
      %v1031 = vpop.f32.mrf.mxu0
      %v1032 = vadd.f32 %v943, %v1031
      %1033 = vmatmul.bf16.gmra.mxu0 %v778
      %v1034 = vpop.f32.mrf.mxu0
      %v1035 = vadd.f32 %v946, %v1034
      %v1036 = vpop.f32.mrf.mxu0
      %v1037 = vadd.f32 %v948, %v1036
      %1038 = vmatmul.bf16.gmra.mxu0 %v781
      %v1039 = vpop.f32.mrf.mxu0
      %v1040 = vadd.f32 %v951, %v1039
      %v1041 = vpop.f32.mrf.mxu0
      %v1042 = vadd.f32 %v953, %v1041
      %1043 = vmatmul.bf16.gmra.mxu0 %v784
      %v1044 = vpop.f32.mrf.mxu0
      %v1045 = vadd.f32 %v956, %v1044
      %v1046 = vpop.f32.mrf.mxu0
      %v1047 = vadd.f32 %v958, %v1046
      %1048 = vmatmul.bf16.gmra.mxu0 %v787
      %v1049 = vpop.f32.mrf.mxu0
      %v1050 = vadd.f32 %v961, %v1049
      %v1051 = vpop.f32.mrf.mxu0
      %v1052 = vadd.f32 %v963, %v1051
      %1053 = vmatmul.bf16.gmra.mxu0 %v790
      %v1054 = vpop.f32.mrf.mxu0
      %v1055 = vadd.f32 %v966, %v1054
      %v1056 = vpop.f32.mrf.mxu0
      %v1057 = vadd.f32 %v968, %v1056
      %1058 = vdwg.mxu0
      %1059 = vst [vmem:[%s276] sm:$0xff] %v980
      %1060 = vst [vmem:[%s276 + $0x8] sm:$0xff] %v982
      %1061 = vst [vmem:[%s276 + $0x10] sm:$0xff] %v985
      %1062 = vst [vmem:[%s276 + $0x18] sm:$0xff] %v987
      %1063 = vst [vmem:[%s276 + $0x20] sm:$0xff] %v990
      %1064 = vst [vmem:[%s276 + $0x28] sm:$0xff] %v992
      %1065 = vst [vmem:[%s276 + $0x30] sm:$0xff] %v995
      %1066 = vst [vmem:[%s276 + $0x38] sm:$0xff] %v997
      %1067 = vst [vmem:[%s276 + $0x40] sm:$0xff] %v1000
      %1068 = vst [vmem:[%s276 + $0x48] sm:$0xff] %v1002
      %1069 = vst [vmem:[%s276 + $0x50] sm:$0xff] %v1005
      %1070 = vst [vmem:[%s276 + $0x58] sm:$0xff] %v1007
      %1071 = vst [vmem:[%s276 + $0x60] sm:$0xff] %v1010
      %1072 = vst [vmem:[%s276 + $0x68] sm:$0xff] %v1012
      %1073 = vst [vmem:[%s276 + $0x70] sm:$0xff] %v1015
      %1074 = vst [vmem:[%s276 + $0x78] sm:$0xff] %v1017
      %1075 = vst [vmem:[%s276 + $0x80] sm:$0xff] %v1020
      %1076 = vst [vmem:[%s276 + $0x88] sm:$0xff] %v1022
      %1077 = vst [vmem:[%s276 + $0x90] sm:$0xff] %v1025
      %1078 = vst [vmem:[%s276 + $0x98] sm:$0xff] %v1027
      %1079 = vst [vmem:[%s276 + $0xa0] sm:$0xff] %v1030
      %1080 = vst [vmem:[%s276 + $0xa8] sm:$0xff] %v1032
      %1081 = vst [vmem:[%s276 + $0xb0] sm:$0xff] %v1035
      %1082 = vst [vmem:[%s276 + $0xb8] sm:$0xff] %v1037
      %1083 = vst [vmem:[%s276 + $0xc0] sm:$0xff] %v1040
      %1084 = vst [vmem:[%s276 + $0xc8] sm:$0xff] %v1042
      %1085 = vst [vmem:[%s276 + $0xd0] sm:$0xff] %v1045
      %1086 = vst [vmem:[%s276 + $0xd8] sm:$0xff] %v1047
      %1087 = vst [vmem:[%s276 + $0xe0] sm:$0xff] %v1050
      %1088 = vst [vmem:[%s276 + $0xe8] sm:$0xff] %v1052
      %1089 = vst [vmem:[%s276 + $0xf0] sm:$0xff] %v1055
      %1090 = vst [vmem:[%s276 + $0xf8] sm:$0xff] %v1057
      %v1091 = vld [vmem:[%s280] sm:$0x1]
      %v1092 = vadd.f32 %v980, %v982
      %v1093 = vadd.f32 %v1092, %v985
      %v1094 = vadd.f32 %v1093, %v987
      %v1095 = vadd.f32 %v1094, %v990
      %v1096 = vadd.f32 %v1095, %v992
      %v1097 = vadd.f32 %v1096, %v995
      %v1098 = vadd.f32 %v1097, %v997
      %v1099 = vadd.f32 %v1098, %v1000
      %v1100 = vadd.f32 %v1099, %v1002
      %v1101 = vadd.f32 %v1100, %v1005
      %v1102 = vadd.f32 %v1101, %v1007
      %v1103 = vadd.f32 %v1102, %v1010
      %v1104 = vadd.f32 %v1103, %v1012
      %v1105 = vadd.f32 %v1104, %v1015
      %v1106 = vadd.f32 %v1105, %v1017
      %v1107 = vadd.f32 %v1106, %v1020
      %v1108 = vadd.f32 %v1107, %v1022
      %v1109 = vadd.f32 %v1108, %v1025
      %v1110 = vadd.f32 %v1109, %v1027
      %v1111 = vadd.f32 %v1110, %v1030
      %v1112 = vadd.f32 %v1111, %v1032
      %v1113 = vadd.f32 %v1112, %v1035
      %v1114 = vadd.f32 %v1113, %v1037
      %v1115 = vadd.f32 %v1114, %v1040
      %v1116 = vadd.f32 %v1115, %v1042
      %v1117 = vadd.f32 %v1116, %v1045
      %v1118 = vadd.f32 %v1117, %v1047
      %v1119 = vadd.f32 %v1118, %v1050
      %v1120 = vadd.f32 %v1119, %v1052
      %v1121 = vadd.f32 %v1120, %v1055
      %v1122 = vadd.f32 %v1121, %v1057
      %v1123 = vrot.slane %v1122, 4
      %v1124 = vadd.f32 %v1122, %v1123
      %v1125 = vrot.slane %v1124, 2
      %v1126 = vadd.f32 %v1124, %v1125
      %v1127 = vrot.slane %v1126, 1
      %v1128 = vadd.f32 %v1126, %v1127
      %v1129 = vadd.f32 %v1091, %v1128
      %1130 = vst [vmem:[%s280] sm:$0x1] %v1129
      %v1131 = vld [vmem:[%s283] sm:$0x1]
      %v1132 = vmul.f32 %v980, %v980
      %v1133 = vmul.f32 %v982, %v982
      %v1134 = vmul.f32 %v985, %v985
      %v1135 = vmul.f32 %v987, %v987
      %v1136 = vmul.f32 %v990, %v990
      %v1137 = vmul.f32 %v992, %v992
      %v1138 = vmul.f32 %v995, %v995
      %v1139 = vmul.f32 %v997, %v997
      %v1140 = vmul.f32 %v1000, %v1000
      %v1141 = vmul.f32 %v1002, %v1002
      %v1142 = vmul.f32 %v1005, %v1005
      %v1143 = vmul.f32 %v1007, %v1007
      %v1144 = vmul.f32 %v1010, %v1010
      %v1145 = vmul.f32 %v1012, %v1012
      %v1146 = vmul.f32 %v1015, %v1015
      %v1147 = vmul.f32 %v1017, %v1017
      %v1148 = vmul.f32 %v1020, %v1020
      %v1149 = vmul.f32 %v1022, %v1022
      %v1150 = vmul.f32 %v1025, %v1025
      %v1151 = vmul.f32 %v1027, %v1027
      %v1152 = vmul.f32 %v1030, %v1030
      %v1153 = vmul.f32 %v1032, %v1032
      %v1154 = vmul.f32 %v1035, %v1035
      %v1155 = vmul.f32 %v1037, %v1037
      %v1156 = vmul.f32 %v1040, %v1040
      %v1157 = vmul.f32 %v1042, %v1042
      %v1158 = vmul.f32 %v1045, %v1045
      %v1159 = vmul.f32 %v1047, %v1047
      %v1160 = vmul.f32 %v1050, %v1050
      %v1161 = vmul.f32 %v1052, %v1052
      %v1162 = vmul.f32 %v1055, %v1055
      %v1163 = vmul.f32 %v1057, %v1057
      %v1164 = vadd.f32 %v1132, %v1133
      %v1165 = vadd.f32 %v1164, %v1134
      %v1166 = vadd.f32 %v1165, %v1135
      %v1167 = vadd.f32 %v1166, %v1136
      %v1168 = vadd.f32 %v1167, %v1137
      %v1169 = vadd.f32 %v1168, %v1138
      %v1170 = vadd.f32 %v1169, %v1139
      %v1171 = vadd.f32 %v1170, %v1140
      %v1172 = vadd.f32 %v1171, %v1141
      %v1173 = vadd.f32 %v1172, %v1142
      %v1174 = vadd.f32 %v1173, %v1143
      %v1175 = vadd.f32 %v1174, %v1144
      %v1176 = vadd.f32 %v1175, %v1145
      %v1177 = vadd.f32 %v1176, %v1146
      %v1178 = vadd.f32 %v1177, %v1147
      %v1179 = vadd.f32 %v1178, %v1148
      %v1180 = vadd.f32 %v1179, %v1149
      %v1181 = vadd.f32 %v1180, %v1150
      %v1182 = vadd.f32 %v1181, %v1151
      %v1183 = vadd.f32 %v1182, %v1152
      %v1184 = vadd.f32 %v1183, %v1153
      %v1185 = vadd.f32 %v1184, %v1154
      %v1186 = vadd.f32 %v1185, %v1155
      %v1187 = vadd.f32 %v1186, %v1156
      %v1188 = vadd.f32 %v1187, %v1157
      %v1189 = vadd.f32 %v1188, %v1158
      %v1190 = vadd.f32 %v1189, %v1159
      %v1191 = vadd.f32 %v1190, %v1160
      %v1192 = vadd.f32 %v1191, %v1161
      %v1193 = vadd.f32 %v1192, %v1162
      %v1194 = vadd.f32 %v1193, %v1163
      %v1195 = vrot.slane %v1194, 4
      %v1196 = vadd.f32 %v1194, %v1195
      %v1197 = vrot.slane %v1196, 2
      %v1198 = vadd.f32 %v1196, %v1197
      %v1199 = vrot.slane %v1198, 1
      %v1200 = vadd.f32 %v1198, %v1199
      %v1201 = vadd.f32 %v1131, %v1200
      %1202 = vst [vmem:[%s283] sm:$0x1] %v1201
      %s1203 = smul.u32 32, %s22
      %p1204 = scmp.lt.s32.totalorder %s21, 1
      %s1205 = scalar_select %p1204, %s21, 1
      %p1206 = scmp.lt.s32.totalorder %s1203, 31
      %s1207 = scalar_select %p1206, %s1203, 31
      %s1208 = smul.addr %s1205, 32
      %s1209 = sadd.s32 %s1207, %s1208
      %s1210 = smul.addr %s1209, 8
      %s1211 = scalar_lea.vmem %s3, %s1210
      %p1212 = scmp.lt.s32.totalorder %s21, 1
      %s1213 = scalar_select %p1212, %s21, 1
      %s1214 = scalar_lea.vmem %s4, %s1213
      %p1215 = scmp.lt.s32.totalorder %s21, 1
      %s1216 = scalar_select %p1215, %s21, 1
      %s1217 = scalar_lea.vmem %s5, %s1216
      // Predicated region
      $region37: #{res_unit_forward.3} parent=31 // pred_check
        %p1218 = pneg %p119
      $region38: #{res_unit_forward.3} parent=31 // pred_check_branch
        %1220 = sbr.rel (%p1218) target = $region40
      $region39: #{res_unit_forward.3} parent=31 // pred_region
        %s1221 = smul.u32 32, %s22
      $region40: #{res_unit_forward.3} parent=31 // pred_fallthru
        _
      // Predicated region
      $region41: #{res_unit_forward.3} parent=31 // pred_check
        %p1222 = pneg %p145
      $region42: #{res_unit_forward.3} parent=31 // pred_check_branch
        %1224 = sbr.rel (%p1222) target = $region44
      $region43: #{res_unit_forward.3} parent=31 // pred_region
        _
      $region44: #{res_unit_forward.3} parent=31 // pred_fallthru
        _
      // Predicated region
      $region45: #{res_unit_forward.3} parent=31 // pred_check
        %p1225 = pneg %p171
      $region46: #{res_unit_forward.3} parent=31 // pred_check_branch
        %1227 = sbr.rel (%p1225) target = $region48
      $region47: #{res_unit_forward.3} parent=31 // pred_region
        _
      $region48: #{res_unit_forward.3} parent=31 // pred_fallthru
        _
    $region32: #{res_unit_forward.3} parent=5 // pred_fallthru
      _
    %p1228 = scmp.le.s32.totalorder 2, %s12
    // Predicated region
    $region49: #{res_unit_forward.3} parent=5 // pred_check
      %p1229 = pneg %p1228
    $region50: #{res_unit_forward.3} parent=5 // pred_check_branch
      %1231 = sbr.rel (%p1229) target = $region52
    $region51: #{res_unit_forward.3} parent=5 // pred_region
      %s1232 = ssub.s32 %s12, 2
      // Predicated region
      $region53: #{res_unit_forward.3} parent=51 // pred_check
        %p1233 = pneg %p125
      $region54: #{res_unit_forward.3} parent=51 // pred_check_branch
        %1235 = sbr.rel (%p1233) target = $region56
      $region55: #{res_unit_forward.3} parent=51 // pred_region
        %s1236 = smul.u32 32, %s24
        %p1237 = scmp.lt.s32.totalorder %s23, 1
        %s1238 = scalar_select %p1237, %s23, 1
        %p1239 = scmp.lt.s32.totalorder %s1236, 31
        %s1240 = scalar_select %p1239, %s1236, 31
        %s1241 = smul.addr %s1238, 32
        %s1242 = sadd.s32 %s1240, %s1241
        %s1243 = smul.addr %s1242, 8
        %s1244 = scalar_lea.vmem %s3, %s1243
      $region56: #{res_unit_forward.3} parent=51 // pred_fallthru
        _
      // Predicated region
      $region57: #{res_unit_forward.3} parent=51 // pred_check
        %p1245 = pneg %p151
      $region58: #{res_unit_forward.3} parent=51 // pred_check_branch
        %1247 = sbr.rel (%p1245) target = $region60
      $region59: #{res_unit_forward.3} parent=51 // pred_region
        %p1248 = scmp.lt.s32.totalorder %s23, 1
        %s1249 = scalar_select %p1248, %s23, 1
        %s1250 = scalar_lea.vmem %s4, %s1249
      $region60: #{res_unit_forward.3} parent=51 // pred_fallthru
        _
      // Predicated region
      $region61: #{res_unit_forward.3} parent=51 // pred_check
        %p1251 = pneg %p177
      $region62: #{res_unit_forward.3} parent=51 // pred_check_branch
        %1253 = sbr.rel (%p1251) target = $region64
      $region63: #{res_unit_forward.3} parent=51 // pred_region
        %p1254 = scmp.lt.s32.totalorder %s23, 1
        %s1255 = scalar_select %p1254, %s23, 1
        %s1256 = scalar_lea.vmem %s5, %s1255
      $region64: #{res_unit_forward.3} parent=51 // pred_fallthru
        _
    $region52: #{res_unit_forward.3} parent=5 // pred_fallthru
      _
  $region6: #{res_unit_forward.3} parent=0 // loop_footer
    %s16 = sadd.s32 1, %s12
  $region7: #{res_unit_forward.3} parent=0 // loop_footer_branch
    %11 = sbr.rel target = $region3
  $region8: #{res_unit_forward.3} parent=0 // loop_exit
    _

</llo_original>
